<compile_context>
chip_gen: v6e
topology: v6e:2x2x1
jax: 0.10.0
libtpu: 0.0.40
codegen_flags: <defaults>
</compile_context>

<pallas_src>
import functools

import numpy as np
import jax
import jax.numpy as jnp
from jax import lax
from jax.experimental import pallas as pl
from jax.experimental.pallas import tpu as pltpu


def _crf_kernel(score_tbl_ref, score_lbt_ref, logp_ref, role_ref,
                trans_ref, start_ref, end_ref, par_ref,
                ll_ref, pred_ref, *, bv_idx):
    T, TB, L = score_tbl_ref.shape          # T timesteps, TB batch tile, L tags

    # ---- gold tags: v_gold in {0, bv_idx};  g = 1.0 where v_gold == bv_idx
    role = role_ref[...]                                              # (TB, NV, T)
    bv_hit = jnp.sum((role == bv_idx).astype(jnp.int32), axis=1)      # (TB, T)
    g = (bv_hit > 0).astype(jnp.float32)                              # (TB, T)

    # ---- numerator: gold path score (length mask is all ones, see header)
    # SMEM scalar table: [t00, t0b, tb0, tbb, start0, startb, end0, endb]
    t00 = par_ref[0]
    t0b = par_ref[1]
    tb0 = par_ref[2]
    tbb = par_ref[3]
    s0 = par_ref[4]
    sb = par_ref[5]
    e0 = par_ref[6]
    eb = par_ref[7]

    emit0 = score_lbt_ref[0]                                          # (TB, T)
    emitb = score_lbt_ref[bv_idx]                                     # (TB, T)
    emit_s = jnp.sum(emit0 + g * (emitb - emit0), axis=1, keepdims=True)   # (TB, 1)

    gc = g[:, :T - 1]                                                 # (TB, T-1)
    gn = g[:, 1:]                                                     # (TB, T-1)
    pair = (t00 + gc * (tb0 - t00) + gn * (t0b - t00)
            + (gc * gn) * (tbb - tb0 - t0b + t00))                    # (TB, T-1)
    trans_s = jnp.sum(pair, axis=1, keepdims=True)                    # (TB, 1)

    start_s = s0 + g[:, 0:1] * (sb - s0)                              # (TB, 1)
    end_s = e0 + g[:, T - 1:T] * (eb - e0)                            # (TB, 1)
    log_num = emit_s + trans_s + start_s + end_s                      # (TB, 1)

    # ---- denominator: forward algorithm (log partition function)
    start_vec = start_ref[...]                                        # (1, L)
    end_vec = end_ref[...]                                            # (1, L)
    trans_b = trans_ref[...][None, :, :]                              # (1, L, L) hoisted

    alpha0 = start_vec + score_tbl_ref[0]                             # (TB, L)

    def body(t, alpha):
        emit_t = score_tbl_ref[t]                                     # (TB, L) dynamic load
        inner = alpha[:, :, None] + emit_t[:, None, :] + trans_b      # (TB, L, L)
        m = jnp.max(inner, axis=1)                                    # (TB, L)
        return m + jnp.log(jnp.sum(jnp.exp(inner - m[:, None, :]), axis=1))

    alpha = lax.fori_loop(1, T, body, alpha0,
                          unroll=True if T <= 64 else 8)

    stops = alpha + end_vec                                           # (TB, L)
    ms = jnp.max(stops, axis=1, keepdims=True)                        # (TB, 1)
    log_denom = ms + jnp.log(
        jnp.sum(jnp.exp(stops - ms), axis=1, keepdims=True))          # (TB, 1)

    # per-example log-likelihood; summed / divided by batch_l in the wrapper
    ll_ref[...] = log_num - log_denom                                 # (TB, 1)

    # ---- pred_idx = argmax over L (first max wins); L is tiny and static, so
    # this is a short elementwise compare chain, lane-dense over T.
    best_val = logp_ref[0]                                            # (TB, T)
    best_idx = jnp.zeros(best_val.shape, jnp.int32)
    for l in range(1, L):
        v = logp_ref[l]
        better = v > best_val
        best_val = jnp.where(better, v, best_val)
        best_idx = jnp.where(better, jnp.int32(l), best_idx)
    pred_ref[...] = best_idx


def predicate_crf_forward(log_p, score, role_label, orig_l, crf_params, bv_idx):
    """Returns (loss / batch_l, pred_idx) like PredicateCRFLoss.forward (training)."""
    transitions, start_trans, end_trans = crf_params
    max_orig_l = int(np.asarray(orig_l).max())

    score_t = score[:, :max_orig_l].astype(jnp.float32)        # (B, T, L)
    logp_t = log_p[:, :max_orig_l].astype(jnp.float32)         # (B, T, L)
    role_t = role_label[:, :, :max_orig_l].astype(jnp.int32)   # (B, NV, T)
    B, T, L = score_t.shape
    NV = role_t.shape[1]

    # layout plumbing (outside the kernel): T leading for the sequential scan,
    # T on lanes for everything else.
    score_tbl = jnp.transpose(score_t, (1, 0, 2))              # (T, B, L)
    score_lbt = jnp.transpose(score_t, (2, 0, 1))              # (L, B, T)
    logp_lbt = jnp.transpose(logp_t, (2, 0, 1))                # (L, B, T)

    trans = transitions.astype(jnp.float32)                    # (L, L)
    start_v = start_trans.reshape(1, L).astype(jnp.float32)    # (1, L)
    end_v = end_trans.reshape(1, L).astype(jnp.float32)        # (1, L)
    params_smem = jnp.stack([
        trans[0, 0], trans[0, bv_idx], trans[bv_idx, 0], trans[bv_idx, bv_idx],
        start_v[0, 0], start_v[0, bv_idx], end_v[0, 0], end_v[0, bv_idx],
    ]).astype(jnp.float32)                                     # (8,)

    # batch tile: one grid step per tile (parallel -> megacore sharding on v7x)
    tb = 8 if (B % 8 == 0) else B
    nb = B // tb

    kernel = functools.partial(_crf_kernel, bv_idx=bv_idx)

    ll, pred_idx = pl.pallas_call(
        kernel,
        grid=(nb,),
        in_specs=[
            pl.BlockSpec((T, tb, L), lambda i: (0, i, 0)),        # score (T,B,L)
            pl.BlockSpec((L, tb, T), lambda i: (0, i, 0)),        # score (L,B,T)
            pl.BlockSpec((L, tb, T), lambda i: (0, i, 0)),        # log_p (L,B,T)
            pl.BlockSpec((tb, NV, T), lambda i: (i, 0, 0)),       # role  (B,NV,T)
            pl.BlockSpec((L, L), lambda i: (0, 0)),               # transitions
            pl.BlockSpec((1, L), lambda i: (0, 0)),               # start
            pl.BlockSpec((1, L), lambda i: (0, 0)),               # end
            pl.BlockSpec(memory_space=pltpu.MemorySpace.SMEM),    # scalar table
        ],
        out_specs=(
            pl.BlockSpec((tb, 1), lambda i: (i, 0)),              # per-ex logL
            pl.BlockSpec((tb, T), lambda i: (i, 0)),              # pred_idx
        ),
        out_shape=(jax.ShapeDtypeStruct((B, 1), jnp.float32),
                   jax.ShapeDtypeStruct((B, T), jnp.int32)),
        compiler_params=pltpu.CompilerParams(
            dimension_semantics=("parallel",)),
    )(score_tbl, score_lbt, logp_lbt, role_t, trans, start_v, end_v, params_smem)

    loss = jnp.sum(ll) / B
    return loss, pred_idx


if __name__ == "__main__":
    # small, deterministic problem: batch=2, source_l=18, num_label=3, num_verbs=2
    B, source_l, L, NV = 2, 18, 3, 2
    labels = np.array(['O', 'B-V', 'I-V'])
    bv_idx = int(np.where(labels == 'B-V')[0][0])

    key = jax.random.PRNGKey(0)
    k1, k2, k3, k4, k5, k6 = jax.random.split(key, 6)

    score = jax.random.normal(k1, (B, source_l, L), jnp.float32)
    log_p = jax.nn.log_softmax(jax.random.normal(k2, (B, source_l, L), jnp.float32), axis=-1)
    role_label = jax.random.randint(k3, (B, NV, source_l), 0, L, jnp.int32)
    orig_l = np.array([16, 12], dtype=np.int32)     # max_orig_l = 16

    # deterministic CRF parameters (ConditionalRandomField(num_tags=L) shapes)
    transitions = 0.1 * jax.random.normal(k4, (L, L), jnp.float32)
    start_trans = 0.1 * jax.random.normal(k5, (L,), jnp.float32)
    end_trans = 0.1 * jax.random.normal(k6, (L,), jnp.float32)

    loss, pred_idx = predicate_crf_forward(
        log_p, score, role_label, orig_l,
        (transitions, start_trans, end_trans), bv_idx)

    jax.block_until_ready((loss, pred_idx))
    assert pred_idx.shape == (B, int(orig_l.max()))
    assert loss.shape == ()
    print("KERNEL_OK")
</pallas_src>

<mosaic_0001>
module attributes {stable_mosaic.version = 11 : i64} {
  func.func @_crf_kernel(%arg0: i32, %arg1: memref<16x2x3xf32, #tpu.memory_space<vmem>>, %arg2: memref<3x2x16xf32, #tpu.memory_space<vmem>>, %arg3: memref<3x2x16xf32, #tpu.memory_space<vmem>>, %arg4: memref<2x2x16xi32, #tpu.memory_space<vmem>>, %arg5: memref<3x3xf32, #tpu.memory_space<vmem>>, %arg6: memref<1x3xf32, #tpu.memory_space<vmem>>, %arg7: memref<1x3xf32, #tpu.memory_space<vmem>>, %arg8: memref<8xf32, #tpu.memory_space<smem>>, %arg9: memref<2x1xf32, #tpu.memory_space<vmem>>, %arg10: memref<2x16xi32, #tpu.memory_space<vmem>>) attributes {dimension_semantics = [#tpu.dimension_semantics<parallel>], iteration_bounds = array<i64: 1>, scalar_prefetch = 0 : i64, scratch_operands = 0 : i64, tpu.core_type = #tpu.core_type<tc>, window_params = [{transform_indices = @transform_0, window_bounds = array<i64: 16, 2, 3>}, {transform_indices = @transform_1, window_bounds = array<i64: 3, 2, 16>}, {transform_indices = @transform_2, window_bounds = array<i64: 3, 2, 16>}, {transform_indices = @transform_3, window_bounds = array<i64: 2, 2, 16>}, {pipeline_mode = #tpu.pipeline_mode<synchronous>, transform_indices = @transform_4, window_bounds = array<i64: 3, 3>}, {pipeline_mode = #tpu.pipeline_mode<synchronous>, transform_indices = @transform_5, window_bounds = array<i64: 1, 3>}, {pipeline_mode = #tpu.pipeline_mode<synchronous>, transform_indices = @transform_6, window_bounds = array<i64: 1, 3>}, {transform_indices = @transform_7, window_bounds = array<i64: 8>}, {transform_indices = @transform_8, window_bounds = array<i64: 2, 1>}, {transform_indices = @transform_9, window_bounds = array<i64: 2, 16>}]} {
    %c0 = arith.constant 0 : index
    %c0_0 = arith.constant 0 : index
    %c0_1 = arith.constant 0 : index
    %0 = vector.load %arg4[%c0, %c0_0, %c0_1] : memref<2x2x16xi32, #tpu.memory_space<vmem>>, vector<2x2x16xi32>
    %c1_i32 = arith.constant 1 : i32
    %1 = vector.broadcast %c1_i32 : i32 to vector<2x2x16xi32>
    %2 = arith.cmpi eq, %0, %1 : vector<2x2x16xi32>
    %3 = arith.extui %2 : vector<2x2x16xi1> to vector<2x2x16xi32>
    %cst = arith.constant dense<0> : vector<2x16xi32>
    %4 = vector.multi_reduction <add>, %3, %cst [1] : vector<2x2x16xi32> to vector<2x16xi32>
    %c0_i32 = arith.constant 0 : i32
    %5 = vector.broadcast %c0_i32 : i32 to vector<2x16xi32>
    %6 = arith.cmpi sgt, %4, %5 : vector<2x16xi32>
    %7 = arith.extui %6 : vector<2x16xi1> to vector<2x16xi32>
    %8 = arith.sitofp %7 : vector<2x16xi32> to vector<2x16xf32>
    %c0_2 = arith.constant 0 : index
    %9 = memref.load %arg8[%c0_2] : memref<8xf32, #tpu.memory_space<smem>>
    %c1 = arith.constant 1 : index
    %10 = memref.load %arg8[%c1] : memref<8xf32, #tpu.memory_space<smem>>
    %c2 = arith.constant 2 : index
    %11 = memref.load %arg8[%c2] : memref<8xf32, #tpu.memory_space<smem>>
    %c3 = arith.constant 3 : index
    %12 = memref.load %arg8[%c3] : memref<8xf32, #tpu.memory_space<smem>>
    %c4 = arith.constant 4 : index
    %13 = memref.load %arg8[%c4] : memref<8xf32, #tpu.memory_space<smem>>
    %c5 = arith.constant 5 : index
    %14 = memref.load %arg8[%c5] : memref<8xf32, #tpu.memory_space<smem>>
    %c6 = arith.constant 6 : index
    %15 = memref.load %arg8[%c6] : memref<8xf32, #tpu.memory_space<smem>>
    %c7 = arith.constant 7 : index
    %16 = memref.load %arg8[%c7] : memref<8xf32, #tpu.memory_space<smem>>
    %c0_3 = arith.constant 0 : index
    %c0_4 = arith.constant 0 : index
    %c0_5 = arith.constant 0 : index
    %17 = vector.load %arg2[%c0_3, %c0_4, %c0_5] : memref<3x2x16xf32, #tpu.memory_space<vmem>>, vector<1x2x16xf32>
    %18 = vector.shape_cast %17 : vector<1x2x16xf32> to vector<2x16xf32>
    %c1_6 = arith.constant 1 : index
    %c0_7 = arith.constant 0 : index
    %c0_8 = arith.constant 0 : index
    %19 = vector.load %arg2[%c1_6, %c0_7, %c0_8] : memref<3x2x16xf32, #tpu.memory_space<vmem>>, vector<1x2x16xf32>
    %20 = vector.shape_cast %19 : vector<1x2x16xf32> to vector<2x16xf32>
    %21 = arith.subf %20, %18 : vector<2x16xf32>
    %22 = arith.mulf %8, %21 : vector<2x16xf32>
    %23 = arith.addf %18, %22 : vector<2x16xf32>
    %cst_9 = arith.constant dense<0.000000e+00> : vector<2xf32>
    %24 = vector.multi_reduction <add>, %23, %cst_9 [1] : vector<2x16xf32> to vector<2xf32>
    %25 = vector.shape_cast %24 : vector<2xf32> to vector<2x1xf32>
    %26 = vector.extract_strided_slice %8 {offsets = [0, 0], sizes = [2, 15], strides = [1, 1]} : vector<2x16xf32> to vector<2x15xf32>
    %27 = vector.extract_strided_slice %8 {offsets = [0, 1], sizes = [2, 15], strides = [1, 1]} : vector<2x16xf32> to vector<2x15xf32>
    %28 = arith.subf %11, %9 : f32
    %29 = vector.broadcast %28 : f32 to vector<2x15xf32>
    %30 = arith.mulf %26, %29 : vector<2x15xf32>
    %31 = vector.broadcast %9 : f32 to vector<2x15xf32>
    %32 = arith.addf %31, %30 : vector<2x15xf32>
    %33 = arith.subf %10, %9 : f32
    %34 = vector.broadcast %33 : f32 to vector<2x15xf32>
    %35 = arith.mulf %27, %34 : vector<2x15xf32>
    %36 = arith.addf %32, %35 : vector<2x15xf32>
    %37 = arith.mulf %26, %27 : vector<2x15xf32>
    %38 = arith.subf %12, %11 : f32
    %39 = arith.subf %38, %10 : f32
    %40 = arith.addf %39, %9 : f32
    %41 = vector.broadcast %40 : f32 to vector<2x15xf32>
    %42 = arith.mulf %37, %41 : vector<2x15xf32>
    %43 = arith.addf %36, %42 : vector<2x15xf32>
    %cst_10 = arith.constant dense<0.000000e+00> : vector<2xf32>
    %44 = vector.multi_reduction <add>, %43, %cst_10 [1] : vector<2x15xf32> to vector<2xf32>
    %45 = vector.shape_cast %44 : vector<2xf32> to vector<2x1xf32>
    %46 = vector.extract_strided_slice %8 {offsets = [0, 0], sizes = [2, 1], strides = [1, 1]} : vector<2x16xf32> to vector<2x1xf32>
    %47 = arith.subf %14, %13 : f32
    %48 = vector.broadcast %47 : f32 to vector<2x1xf32>
    %49 = arith.mulf %46, %48 : vector<2x1xf32>
    %50 = vector.broadcast %13 : f32 to vector<2x1xf32>
    %51 = arith.addf %50, %49 : vector<2x1xf32>
    %52 = vector.extract_strided_slice %8 {offsets = [0, 15], sizes = [2, 1], strides = [1, 1]} : vector<2x16xf32> to vector<2x1xf32>
    %53 = arith.subf %16, %15 : f32
    %54 = vector.broadcast %53 : f32 to vector<2x1xf32>
    %55 = arith.mulf %52, %54 : vector<2x1xf32>
    %56 = vector.broadcast %15 : f32 to vector<2x1xf32>
    %57 = arith.addf %56, %55 : vector<2x1xf32>
    %58 = arith.addf %25, %45 : vector<2x1xf32>
    %59 = arith.addf %58, %51 : vector<2x1xf32>
    %60 = arith.addf %59, %57 : vector<2x1xf32>
    %c0_11 = arith.constant 0 : index
    %c0_12 = arith.constant 0 : index
    %61 = vector.load %arg6[%c0_11, %c0_12] : memref<1x3xf32, #tpu.memory_space<vmem>>, vector<1x3xf32>
    %c0_13 = arith.constant 0 : index
    %c0_14 = arith.constant 0 : index
    %62 = vector.load %arg7[%c0_13, %c0_14] : memref<1x3xf32, #tpu.memory_space<vmem>>, vector<1x3xf32>
    %c0_15 = arith.constant 0 : index
    %c0_16 = arith.constant 0 : index
    %63 = vector.load %arg5[%c0_15, %c0_16] : memref<3x3xf32, #tpu.memory_space<vmem>>, vector<3x3xf32>
    %64 = vector.shape_cast %63 : vector<3x3xf32> to vector<1x3x3xf32>
    %c0_17 = arith.constant 0 : index
    %c0_18 = arith.constant 0 : index
    %c0_19 = arith.constant 0 : index
    %65 = vector.load %arg1[%c0_17, %c0_18, %c0_19] : memref<16x2x3xf32, #tpu.memory_space<vmem>>, vector<1x2x3xf32>
    %66 = vector.shape_cast %65 : vector<1x2x3xf32> to vector<2x3xf32>
    %67 = vector.broadcast %61 : vector<1x3xf32> to vector<2x3xf32>
    %68 = arith.addf %67, %66 : vector<2x3xf32>
    %c1_i32_20 = arith.constant 1 : i32
    %69 = arith.index_cast %c1_i32_20 : i32 to index
    %c0_21 = arith.constant 0 : index
    %c0_22 = arith.constant 0 : index
    %70 = vector.load %arg1[%69, %c0_21, %c0_22] : memref<16x2x3xf32, #tpu.memory_space<vmem>>, vector<1x2x3xf32>
    %71 = vector.shape_cast %70 : vector<1x2x3xf32> to vector<2x3xf32>
    %72 = vector.shape_cast %68 : vector<2x3xf32> to vector<2x3x1xf32>
    %73 = vector.shape_cast %71 : vector<2x3xf32> to vector<2x1x3xf32>
    %74 = vector.broadcast %72 : vector<2x3x1xf32> to vector<2x3x3xf32>
    %75 = vector.broadcast %73 : vector<2x1x3xf32> to vector<2x3x3xf32>
    %76 = arith.addf %74, %75 : vector<2x3x3xf32>
    %77 = vector.broadcast %64 : vector<1x3x3xf32> to vector<2x3x3xf32>
    %78 = arith.addf %76, %77 : vector<2x3x3xf32>
    %cst_23 = arith.constant dense<0xFF800000> : vector<2x3xf32>
    %79 = vector.multi_reduction <maximumf>, %78, %cst_23 [1] : vector<2x3x3xf32> to vector<2x3xf32>
    %80 = vector.shape_cast %79 : vector<2x3xf32> to vector<2x1x3xf32>
    %81 = vector.broadcast %80 : vector<2x1x3xf32> to vector<2x3x3xf32>
    %82 = arith.subf %78, %81 : vector<2x3x3xf32>
    %83 = math.exp %82 : vector<2x3x3xf32>
    %cst_24 = arith.constant dense<0.000000e+00> : vector<2x3xf32>
    %84 = vector.multi_reduction <add>, %83, %cst_24 [1] : vector<2x3x3xf32> to vector<2x3xf32>
    %85 = math.log %84 : vector<2x3xf32>
    %86 = arith.addf %79, %85 : vector<2x3xf32>
    %c2_i32 = arith.constant 2 : i32
    %87 = arith.index_cast %c2_i32 : i32 to index
    %c0_25 = arith.constant 0 : index
    %c0_26 = arith.constant 0 : index
    %88 = vector.load %arg1[%87, %c0_25, %c0_26] : memref<16x2x3xf32, #tpu.memory_space<vmem>>, vector<1x2x3xf32>
    %89 = vector.shape_cast %88 : vector<1x2x3xf32> to vector<2x3xf32>
    %90 = vector.shape_cast %86 : vector<2x3xf32> to vector<2x3x1xf32>
    %91 = vector.shape_cast %89 : vector<2x3xf32> to vector<2x1x3xf32>
    %92 = vector.broadcast %90 : vector<2x3x1xf32> to vector<2x3x3xf32>
    %93 = vector.broadcast %91 : vector<2x1x3xf32> to vector<2x3x3xf32>
    %94 = arith.addf %92, %93 : vector<2x3x3xf32>
    %95 = vector.broadcast %64 : vector<1x3x3xf32> to vector<2x3x3xf32>
    %96 = arith.addf %94, %95 : vector<2x3x3xf32>
    %cst_27 = arith.constant dense<0xFF800000> : vector<2x3xf32>
    %97 = vector.multi_reduction <maximumf>, %96, %cst_27 [1] : vector<2x3x3xf32> to vector<2x3xf32>
    %98 = vector.shape_cast %97 : vector<2x3xf32> to vector<2x1x3xf32>
    %99 = vector.broadcast %98 : vector<2x1x3xf32> to vector<2x3x3xf32>
    %100 = arith.subf %96, %99 : vector<2x3x3xf32>
    %101 = math.exp %100 : vector<2x3x3xf32>
    %cst_28 = arith.constant dense<0.000000e+00> : vector<2x3xf32>
    %102 = vector.multi_reduction <add>, %101, %cst_28 [1] : vector<2x3x3xf32> to vector<2x3xf32>
    %103 = math.log %102 : vector<2x3xf32>
    %104 = arith.addf %97, %103 : vector<2x3xf32>
    %c3_i32 = arith.constant 3 : i32
    %105 = arith.index_cast %c3_i32 : i32 to index
    %c0_29 = arith.constant 0 : index
    %c0_30 = arith.constant 0 : index
    %106 = vector.load %arg1[%105, %c0_29, %c0_30] : memref<16x2x3xf32, #tpu.memory_space<vmem>>, vector<1x2x3xf32>
    %107 = vector.shape_cast %106 : vector<1x2x3xf32> to vector<2x3xf32>
    %108 = vector.shape_cast %104 : vector<2x3xf32> to vector<2x3x1xf32>
    %109 = vector.shape_cast %107 : vector<2x3xf32> to vector<2x1x3xf32>
    %110 = vector.broadcast %108 : vector<2x3x1xf32> to vector<2x3x3xf32>
    %111 = vector.broadcast %109 : vector<2x1x3xf32> to vector<2x3x3xf32>
    %112 = arith.addf %110, %111 : vector<2x3x3xf32>
    %113 = vector.broadcast %64 : vector<1x3x3xf32> to vector<2x3x3xf32>
    %114 = arith.addf %112, %113 : vector<2x3x3xf32>
    %cst_31 = arith.constant dense<0xFF800000> : vector<2x3xf32>
    %115 = vector.multi_reduction <maximumf>, %114, %cst_31 [1] : vector<2x3x3xf32> to vector<2x3xf32>
    %116 = vector.shape_cast %115 : vector<2x3xf32> to vector<2x1x3xf32>
    %117 = vector.broadcast %116 : vector<2x1x3xf32> to vector<2x3x3xf32>
    %118 = arith.subf %114, %117 : vector<2x3x3xf32>
    %119 = math.exp %118 : vector<2x3x3xf32>
    %cst_32 = arith.constant dense<0.000000e+00> : vector<2x3xf32>
    %120 = vector.multi_reduction <add>, %119, %cst_32 [1] : vector<2x3x3xf32> to vector<2x3xf32>
    %121 = math.log %120 : vector<2x3xf32>
    %122 = arith.addf %115, %121 : vector<2x3xf32>
    %c4_i32 = arith.constant 4 : i32
    %123 = arith.index_cast %c4_i32 : i32 to index
    %c0_33 = arith.constant 0 : index
    %c0_34 = arith.constant 0 : index
    %124 = vector.load %arg1[%123, %c0_33, %c0_34] : memref<16x2x3xf32, #tpu.memory_space<vmem>>, vector<1x2x3xf32>
    %125 = vector.shape_cast %124 : vector<1x2x3xf32> to vector<2x3xf32>
    %126 = vector.shape_cast %122 : vector<2x3xf32> to vector<2x3x1xf32>
    %127 = vector.shape_cast %125 : vector<2x3xf32> to vector<2x1x3xf32>
    %128 = vector.broadcast %126 : vector<2x3x1xf32> to vector<2x3x3xf32>
    %129 = vector.broadcast %127 : vector<2x1x3xf32> to vector<2x3x3xf32>
    %130 = arith.addf %128, %129 : vector<2x3x3xf32>
    %131 = vector.broadcast %64 : vector<1x3x3xf32> to vector<2x3x3xf32>
    %132 = arith.addf %130, %131 : vector<2x3x3xf32>
    %cst_35 = arith.constant dense<0xFF800000> : vector<2x3xf32>
    %133 = vector.multi_reduction <maximumf>, %132, %cst_35 [1] : vector<2x3x3xf32> to vector<2x3xf32>
    %134 = vector.shape_cast %133 : vector<2x3xf32> to vector<2x1x3xf32>
    %135 = vector.broadcast %134 : vector<2x1x3xf32> to vector<2x3x3xf32>
    %136 = arith.subf %132, %135 : vector<2x3x3xf32>
    %137 = math.exp %136 : vector<2x3x3xf32>
    %cst_36 = arith.constant dense<0.000000e+00> : vector<2x3xf32>
    %138 = vector.multi_reduction <add>, %137, %cst_36 [1] : vector<2x3x3xf32> to vector<2x3xf32>
    %139 = math.log %138 : vector<2x3xf32>
    %140 = arith.addf %133, %139 : vector<2x3xf32>
    %c5_i32 = arith.constant 5 : i32
    %141 = arith.index_cast %c5_i32 : i32 to index
    %c0_37 = arith.constant 0 : index
    %c0_38 = arith.constant 0 : index
    %142 = vector.load %arg1[%141, %c0_37, %c0_38] : memref<16x2x3xf32, #tpu.memory_space<vmem>>, vector<1x2x3xf32>
    %143 = vector.shape_cast %142 : vector<1x2x3xf32> to vector<2x3xf32>
    %144 = vector.shape_cast %140 : vector<2x3xf32> to vector<2x3x1xf32>
    %145 = vector.shape_cast %143 : vector<2x3xf32> to vector<2x1x3xf32>
    %146 = vector.broadcast %144 : vector<2x3x1xf32> to vector<2x3x3xf32>
    %147 = vector.broadcast %145 : vector<2x1x3xf32> to vector<2x3x3xf32>
    %148 = arith.addf %146, %147 : vector<2x3x3xf32>
    %149 = vector.broadcast %64 : vector<1x3x3xf32> to vector<2x3x3xf32>
    %150 = arith.addf %148, %149 : vector<2x3x3xf32>
    %cst_39 = arith.constant dense<0xFF800000> : vector<2x3xf32>
    %151 = vector.multi_reduction <maximumf>, %150, %cst_39 [1] : vector<2x3x3xf32> to vector<2x3xf32>
    %152 = vector.shape_cast %151 : vector<2x3xf32> to vector<2x1x3xf32>
    %153 = vector.broadcast %152 : vector<2x1x3xf32> to vector<2x3x3xf32>
    %154 = arith.subf %150, %153 : vector<2x3x3xf32>
    %155 = math.exp %154 : vector<2x3x3xf32>
    %cst_40 = arith.constant dense<0.000000e+00> : vector<2x3xf32>
    %156 = vector.multi_reduction <add>, %155, %cst_40 [1] : vector<2x3x3xf32> to vector<2x3xf32>
    %157 = math.log %156 : vector<2x3xf32>
    %158 = arith.addf %151, %157 : vector<2x3xf32>
    %c6_i32 = arith.constant 6 : i32
    %159 = arith.index_cast %c6_i32 : i32 to index
    %c0_41 = arith.constant 0 : index
    %c0_42 = arith.constant 0 : index
    %160 = vector.load %arg1[%159, %c0_41, %c0_42] : memref<16x2x3xf32, #tpu.memory_space<vmem>>, vector<1x2x3xf32>
    %161 = vector.shape_cast %160 : vector<1x2x3xf32> to vector<2x3xf32>
    %162 = vector.shape_cast %158 : vector<2x3xf32> to vector<2x3x1xf32>
    %163 = vector.shape_cast %161 : vector<2x3xf32> to vector<2x1x3xf32>
    %164 = vector.broadcast %162 : vector<2x3x1xf32> to vector<2x3x3xf32>
    %165 = vector.broadcast %163 : vector<2x1x3xf32> to vector<2x3x3xf32>
    %166 = arith.addf %164, %165 : vector<2x3x3xf32>
    %167 = vector.broadcast %64 : vector<1x3x3xf32> to vector<2x3x3xf32>
    %168 = arith.addf %166, %167 : vector<2x3x3xf32>
    %cst_43 = arith.constant dense<0xFF800000> : vector<2x3xf32>
    %169 = vector.multi_reduction <maximumf>, %168, %cst_43 [1] : vector<2x3x3xf32> to vector<2x3xf32>
    %170 = vector.shape_cast %169 : vector<2x3xf32> to vector<2x1x3xf32>
    %171 = vector.broadcast %170 : vector<2x1x3xf32> to vector<2x3x3xf32>
    %172 = arith.subf %168, %171 : vector<2x3x3xf32>
    %173 = math.exp %172 : vector<2x3x3xf32>
    %cst_44 = arith.constant dense<0.000000e+00> : vector<2x3xf32>
    %174 = vector.multi_reduction <add>, %173, %cst_44 [1] : vector<2x3x3xf32> to vector<2x3xf32>
    %175 = math.log %174 : vector<2x3xf32>
    %176 = arith.addf %169, %175 : vector<2x3xf32>
    %c7_i32 = arith.constant 7 : i32
    %177 = arith.index_cast %c7_i32 : i32 to index
    %c0_45 = arith.constant 0 : index
    %c0_46 = arith.constant 0 : index
    %178 = vector.load %arg1[%177, %c0_45, %c0_46] : memref<16x2x3xf32, #tpu.memory_space<vmem>>, vector<1x2x3xf32>
    %179 = vector.shape_cast %178 : vector<1x2x3xf32> to vector<2x3xf32>
    %180 = vector.shape_cast %176 : vector<2x3xf32> to vector<2x3x1xf32>
    %181 = vector.shape_cast %179 : vector<2x3xf32> to vector<2x1x3xf32>
    %182 = vector.broadcast %180 : vector<2x3x1xf32> to vector<2x3x3xf32>
    %183 = vector.broadcast %181 : vector<2x1x3xf32> to vector<2x3x3xf32>
    %184 = arith.addf %182, %183 : vector<2x3x3xf32>
    %185 = vector.broadcast %64 : vector<1x3x3xf32> to vector<2x3x3xf32>
    %186 = arith.addf %184, %185 : vector<2x3x3xf32>
    %cst_47 = arith.constant dense<0xFF800000> : vector<2x3xf32>
    %187 = vector.multi_reduction <maximumf>, %186, %cst_47 [1] : vector<2x3x3xf32> to vector<2x3xf32>
    %188 = vector.shape_cast %187 : vector<2x3xf32> to vector<2x1x3xf32>
    %189 = vector.broadcast %188 : vector<2x1x3xf32> to vector<2x3x3xf32>
    %190 = arith.subf %186, %189 : vector<2x3x3xf32>
    %191 = math.exp %190 : vector<2x3x3xf32>
    %cst_48 = arith.constant dense<0.000000e+00> : vector<2x3xf32>
    %192 = vector.multi_reduction <add>, %191, %cst_48 [1] : vector<2x3x3xf32> to vector<2x3xf32>
    %193 = math.log %192 : vector<2x3xf32>
    %194 = arith.addf %187, %193 : vector<2x3xf32>
    %c8_i32 = arith.constant 8 : i32
    %195 = arith.index_cast %c8_i32 : i32 to index
    %c0_49 = arith.constant 0 : index
    %c0_50 = arith.constant 0 : index
    %196 = vector.load %arg1[%195, %c0_49, %c0_50] : memref<16x2x3xf32, #tpu.memory_space<vmem>>, vector<1x2x3xf32>
    %197 = vector.shape_cast %196 : vector<1x2x3xf32> to vector<2x3xf32>
    %198 = vector.shape_cast %194 : vector<2x3xf32> to vector<2x3x1xf32>
    %199 = vector.shape_cast %197 : vector<2x3xf32> to vector<2x1x3xf32>
    %200 = vector.broadcast %198 : vector<2x3x1xf32> to vector<2x3x3xf32>
    %201 = vector.broadcast %199 : vector<2x1x3xf32> to vector<2x3x3xf32>
    %202 = arith.addf %200, %201 : vector<2x3x3xf32>
    %203 = vector.broadcast %64 : vector<1x3x3xf32> to vector<2x3x3xf32>
    %204 = arith.addf %202, %203 : vector<2x3x3xf32>
    %cst_51 = arith.constant dense<0xFF800000> : vector<2x3xf32>
    %205 = vector.multi_reduction <maximumf>, %204, %cst_51 [1] : vector<2x3x3xf32> to vector<2x3xf32>
    %206 = vector.shape_cast %205 : vector<2x3xf32> to vector<2x1x3xf32>
    %207 = vector.broadcast %206 : vector<2x1x3xf32> to vector<2x3x3xf32>
    %208 = arith.subf %204, %207 : vector<2x3x3xf32>
    %209 = math.exp %208 : vector<2x3x3xf32>
    %cst_52 = arith.constant dense<0.000000e+00> : vector<2x3xf32>
    %210 = vector.multi_reduction <add>, %209, %cst_52 [1] : vector<2x3x3xf32> to vector<2x3xf32>
    %211 = math.log %210 : vector<2x3xf32>
    %212 = arith.addf %205, %211 : vector<2x3xf32>
    %c9_i32 = arith.constant 9 : i32
    %213 = arith.index_cast %c9_i32 : i32 to index
    %c0_53 = arith.constant 0 : index
    %c0_54 = arith.constant 0 : index
    %214 = vector.load %arg1[%213, %c0_53, %c0_54] : memref<16x2x3xf32, #tpu.memory_space<vmem>>, vector<1x2x3xf32>
    %215 = vector.shape_cast %214 : vector<1x2x3xf32> to vector<2x3xf32>
    %216 = vector.shape_cast %212 : vector<2x3xf32> to vector<2x3x1xf32>
    %217 = vector.shape_cast %215 : vector<2x3xf32> to vector<2x1x3xf32>
    %218 = vector.broadcast %216 : vector<2x3x1xf32> to vector<2x3x3xf32>
    %219 = vector.broadcast %217 : vector<2x1x3xf32> to vector<2x3x3xf32>
    %220 = arith.addf %218, %219 : vector<2x3x3xf32>
    %221 = vector.broadcast %64 : vector<1x3x3xf32> to vector<2x3x3xf32>
    %222 = arith.addf %220, %221 : vector<2x3x3xf32>
    %cst_55 = arith.constant dense<0xFF800000> : vector<2x3xf32>
    %223 = vector.multi_reduction <maximumf>, %222, %cst_55 [1] : vector<2x3x3xf32> to vector<2x3xf32>
    %224 = vector.shape_cast %223 : vector<2x3xf32> to vector<2x1x3xf32>
    %225 = vector.broadcast %224 : vector<2x1x3xf32> to vector<2x3x3xf32>
    %226 = arith.subf %222, %225 : vector<2x3x3xf32>
    %227 = math.exp %226 : vector<2x3x3xf32>
    %cst_56 = arith.constant dense<0.000000e+00> : vector<2x3xf32>
    %228 = vector.multi_reduction <add>, %227, %cst_56 [1] : vector<2x3x3xf32> to vector<2x3xf32>
    %229 = math.log %228 : vector<2x3xf32>
    %230 = arith.addf %223, %229 : vector<2x3xf32>
    %c10_i32 = arith.constant 10 : i32
    %231 = arith.index_cast %c10_i32 : i32 to index
    %c0_57 = arith.constant 0 : index
    %c0_58 = arith.constant 0 : index
    %232 = vector.load %arg1[%231, %c0_57, %c0_58] : memref<16x2x3xf32, #tpu.memory_space<vmem>>, vector<1x2x3xf32>
    %233 = vector.shape_cast %232 : vector<1x2x3xf32> to vector<2x3xf32>
    %234 = vector.shape_cast %230 : vector<2x3xf32> to vector<2x3x1xf32>
    %235 = vector.shape_cast %233 : vector<2x3xf32> to vector<2x1x3xf32>
    %236 = vector.broadcast %234 : vector<2x3x1xf32> to vector<2x3x3xf32>
    %237 = vector.broadcast %235 : vector<2x1x3xf32> to vector<2x3x3xf32>
    %238 = arith.addf %236, %237 : vector<2x3x3xf32>
    %239 = vector.broadcast %64 : vector<1x3x3xf32> to vector<2x3x3xf32>
    %240 = arith.addf %238, %239 : vector<2x3x3xf32>
    %cst_59 = arith.constant dense<0xFF800000> : vector<2x3xf32>
    %241 = vector.multi_reduction <maximumf>, %240, %cst_59 [1] : vector<2x3x3xf32> to vector<2x3xf32>
    %242 = vector.shape_cast %241 : vector<2x3xf32> to vector<2x1x3xf32>
    %243 = vector.broadcast %242 : vector<2x1x3xf32> to vector<2x3x3xf32>
    %244 = arith.subf %240, %243 : vector<2x3x3xf32>
    %245 = math.exp %244 : vector<2x3x3xf32>
    %cst_60 = arith.constant dense<0.000000e+00> : vector<2x3xf32>
    %246 = vector.multi_reduction <add>, %245, %cst_60 [1] : vector<2x3x3xf32> to vector<2x3xf32>
    %247 = math.log %246 : vector<2x3xf32>
    %248 = arith.addf %241, %247 : vector<2x3xf32>
    %c11_i32 = arith.constant 11 : i32
    %249 = arith.index_cast %c11_i32 : i32 to index
    %c0_61 = arith.constant 0 : index
    %c0_62 = arith.constant 0 : index
    %250 = vector.load %arg1[%249, %c0_61, %c0_62] : memref<16x2x3xf32, #tpu.memory_space<vmem>>, vector<1x2x3xf32>
    %251 = vector.shape_cast %250 : vector<1x2x3xf32> to vector<2x3xf32>
    %252 = vector.shape_cast %248 : vector<2x3xf32> to vector<2x3x1xf32>
    %253 = vector.shape_cast %251 : vector<2x3xf32> to vector<2x1x3xf32>
    %254 = vector.broadcast %252 : vector<2x3x1xf32> to vector<2x3x3xf32>
    %255 = vector.broadcast %253 : vector<2x1x3xf32> to vector<2x3x3xf32>
    %256 = arith.addf %254, %255 : vector<2x3x3xf32>
    %257 = vector.broadcast %64 : vector<1x3x3xf32> to vector<2x3x3xf32>
    %258 = arith.addf %256, %257 : vector<2x3x3xf32>
    %cst_63 = arith.constant dense<0xFF800000> : vector<2x3xf32>
    %259 = vector.multi_reduction <maximumf>, %258, %cst_63 [1] : vector<2x3x3xf32> to vector<2x3xf32>
    %260 = vector.shape_cast %259 : vector<2x3xf32> to vector<2x1x3xf32>
    %261 = vector.broadcast %260 : vector<2x1x3xf32> to vector<2x3x3xf32>
    %262 = arith.subf %258, %261 : vector<2x3x3xf32>
    %263 = math.exp %262 : vector<2x3x3xf32>
    %cst_64 = arith.constant dense<0.000000e+00> : vector<2x3xf32>
    %264 = vector.multi_reduction <add>, %263, %cst_64 [1] : vector<2x3x3xf32> to vector<2x3xf32>
    %265 = math.log %264 : vector<2x3xf32>
    %266 = arith.addf %259, %265 : vector<2x3xf32>
    %c12_i32 = arith.constant 12 : i32
    %267 = arith.index_cast %c12_i32 : i32 to index
    %c0_65 = arith.constant 0 : index
    %c0_66 = arith.constant 0 : index
    %268 = vector.load %arg1[%267, %c0_65, %c0_66] : memref<16x2x3xf32, #tpu.memory_space<vmem>>, vector<1x2x3xf32>
    %269 = vector.shape_cast %268 : vector<1x2x3xf32> to vector<2x3xf32>
    %270 = vector.shape_cast %266 : vector<2x3xf32> to vector<2x3x1xf32>
    %271 = vector.shape_cast %269 : vector<2x3xf32> to vector<2x1x3xf32>
    %272 = vector.broadcast %270 : vector<2x3x1xf32> to vector<2x3x3xf32>
    %273 = vector.broadcast %271 : vector<2x1x3xf32> to vector<2x3x3xf32>
    %274 = arith.addf %272, %273 : vector<2x3x3xf32>
    %275 = vector.broadcast %64 : vector<1x3x3xf32> to vector<2x3x3xf32>
    %276 = arith.addf %274, %275 : vector<2x3x3xf32>
    %cst_67 = arith.constant dense<0xFF800000> : vector<2x3xf32>
    %277 = vector.multi_reduction <maximumf>, %276, %cst_67 [1] : vector<2x3x3xf32> to vector<2x3xf32>
    %278 = vector.shape_cast %277 : vector<2x3xf32> to vector<2x1x3xf32>
    %279 = vector.broadcast %278 : vector<2x1x3xf32> to vector<2x3x3xf32>
    %280 = arith.subf %276, %279 : vector<2x3x3xf32>
    %281 = math.exp %280 : vector<2x3x3xf32>
    %cst_68 = arith.constant dense<0.000000e+00> : vector<2x3xf32>
    %282 = vector.multi_reduction <add>, %281, %cst_68 [1] : vector<2x3x3xf32> to vector<2x3xf32>
    %283 = math.log %282 : vector<2x3xf32>
    %284 = arith.addf %277, %283 : vector<2x3xf32>
    %c13_i32 = arith.constant 13 : i32
    %285 = arith.index_cast %c13_i32 : i32 to index
    %c0_69 = arith.constant 0 : index
    %c0_70 = arith.constant 0 : index
    %286 = vector.load %arg1[%285, %c0_69, %c0_70] : memref<16x2x3xf32, #tpu.memory_space<vmem>>, vector<1x2x3xf32>
    %287 = vector.shape_cast %286 : vector<1x2x3xf32> to vector<2x3xf32>
    %288 = vector.shape_cast %284 : vector<2x3xf32> to vector<2x3x1xf32>
    %289 = vector.shape_cast %287 : vector<2x3xf32> to vector<2x1x3xf32>
    %290 = vector.broadcast %288 : vector<2x3x1xf32> to vector<2x3x3xf32>
    %291 = vector.broadcast %289 : vector<2x1x3xf32> to vector<2x3x3xf32>
    %292 = arith.addf %290, %291 : vector<2x3x3xf32>
    %293 = vector.broadcast %64 : vector<1x3x3xf32> to vector<2x3x3xf32>
    %294 = arith.addf %292, %293 : vector<2x3x3xf32>
    %cst_71 = arith.constant dense<0xFF800000> : vector<2x3xf32>
    %295 = vector.multi_reduction <maximumf>, %294, %cst_71 [1] : vector<2x3x3xf32> to vector<2x3xf32>
    %296 = vector.shape_cast %295 : vector<2x3xf32> to vector<2x1x3xf32>
    %297 = vector.broadcast %296 : vector<2x1x3xf32> to vector<2x3x3xf32>
    %298 = arith.subf %294, %297 : vector<2x3x3xf32>
    %299 = math.exp %298 : vector<2x3x3xf32>
    %cst_72 = arith.constant dense<0.000000e+00> : vector<2x3xf32>
    %300 = vector.multi_reduction <add>, %299, %cst_72 [1] : vector<2x3x3xf32> to vector<2x3xf32>
    %301 = math.log %300 : vector<2x3xf32>
    %302 = arith.addf %295, %301 : vector<2x3xf32>
    %c14_i32 = arith.constant 14 : i32
    %303 = arith.index_cast %c14_i32 : i32 to index
    %c0_73 = arith.constant 0 : index
    %c0_74 = arith.constant 0 : index
    %304 = vector.load %arg1[%303, %c0_73, %c0_74] : memref<16x2x3xf32, #tpu.memory_space<vmem>>, vector<1x2x3xf32>
    %305 = vector.shape_cast %304 : vector<1x2x3xf32> to vector<2x3xf32>
    %306 = vector.shape_cast %302 : vector<2x3xf32> to vector<2x3x1xf32>
    %307 = vector.shape_cast %305 : vector<2x3xf32> to vector<2x1x3xf32>
    %308 = vector.broadcast %306 : vector<2x3x1xf32> to vector<2x3x3xf32>
    %309 = vector.broadcast %307 : vector<2x1x3xf32> to vector<2x3x3xf32>
    %310 = arith.addf %308, %309 : vector<2x3x3xf32>
    %311 = vector.broadcast %64 : vector<1x3x3xf32> to vector<2x3x3xf32>
    %312 = arith.addf %310, %311 : vector<2x3x3xf32>
    %cst_75 = arith.constant dense<0xFF800000> : vector<2x3xf32>
    %313 = vector.multi_reduction <maximumf>, %312, %cst_75 [1] : vector<2x3x3xf32> to vector<2x3xf32>
    %314 = vector.shape_cast %313 : vector<2x3xf32> to vector<2x1x3xf32>
    %315 = vector.broadcast %314 : vector<2x1x3xf32> to vector<2x3x3xf32>
    %316 = arith.subf %312, %315 : vector<2x3x3xf32>
    %317 = math.exp %316 : vector<2x3x3xf32>
    %cst_76 = arith.constant dense<0.000000e+00> : vector<2x3xf32>
    %318 = vector.multi_reduction <add>, %317, %cst_76 [1] : vector<2x3x3xf32> to vector<2x3xf32>
    %319 = math.log %318 : vector<2x3xf32>
    %320 = arith.addf %313, %319 : vector<2x3xf32>
    %c15_i32 = arith.constant 15 : i32
    %321 = arith.index_cast %c15_i32 : i32 to index
    %c0_77 = arith.constant 0 : index
    %c0_78 = arith.constant 0 : index
    %322 = vector.load %arg1[%321, %c0_77, %c0_78] : memref<16x2x3xf32, #tpu.memory_space<vmem>>, vector<1x2x3xf32>
    %323 = vector.shape_cast %322 : vector<1x2x3xf32> to vector<2x3xf32>
    %324 = vector.shape_cast %320 : vector<2x3xf32> to vector<2x3x1xf32>
    %325 = vector.shape_cast %323 : vector<2x3xf32> to vector<2x1x3xf32>
    %326 = vector.broadcast %324 : vector<2x3x1xf32> to vector<2x3x3xf32>
    %327 = vector.broadcast %325 : vector<2x1x3xf32> to vector<2x3x3xf32>
    %328 = arith.addf %326, %327 : vector<2x3x3xf32>
    %329 = vector.broadcast %64 : vector<1x3x3xf32> to vector<2x3x3xf32>
    %330 = arith.addf %328, %329 : vector<2x3x3xf32>
    %cst_79 = arith.constant dense<0xFF800000> : vector<2x3xf32>
    %331 = vector.multi_reduction <maximumf>, %330, %cst_79 [1] : vector<2x3x3xf32> to vector<2x3xf32>
    %332 = vector.shape_cast %331 : vector<2x3xf32> to vector<2x1x3xf32>
    %333 = vector.broadcast %332 : vector<2x1x3xf32> to vector<2x3x3xf32>
    %334 = arith.subf %330, %333 : vector<2x3x3xf32>
    %335 = math.exp %334 : vector<2x3x3xf32>
    %cst_80 = arith.constant dense<0.000000e+00> : vector<2x3xf32>
    %336 = vector.multi_reduction <add>, %335, %cst_80 [1] : vector<2x3x3xf32> to vector<2x3xf32>
    %337 = math.log %336 : vector<2x3xf32>
    %338 = arith.addf %331, %337 : vector<2x3xf32>
    %c15_i32_81 = arith.constant 15 : i32
    %339 = vector.broadcast %62 : vector<1x3xf32> to vector<2x3xf32>
    %340 = arith.addf %338, %339 : vector<2x3xf32>
    %cst_82 = arith.constant dense<0xFF800000> : vector<2xf32>
    %341 = vector.multi_reduction <maximumf>, %340, %cst_82 [1] : vector<2x3xf32> to vector<2xf32>
    %342 = vector.shape_cast %341 : vector<2xf32> to vector<2x1xf32>
    %343 = vector.broadcast %342 : vector<2x1xf32> to vector<2x3xf32>
    %344 = arith.subf %340, %343 : vector<2x3xf32>
    %345 = math.exp %344 : vector<2x3xf32>
    %cst_83 = arith.constant dense<0.000000e+00> : vector<2xf32>
    %346 = vector.multi_reduction <add>, %345, %cst_83 [1] : vector<2x3xf32> to vector<2xf32>
    %347 = vector.shape_cast %346 : vector<2xf32> to vector<2x1xf32>
    %348 = math.log %347 : vector<2x1xf32>
    %349 = arith.addf %342, %348 : vector<2x1xf32>
    %350 = arith.subf %60, %349 : vector<2x1xf32>
    %c0_84 = arith.constant 0 : index
    %c0_85 = arith.constant 0 : index
    %351 = vector.load %arg9[%c0_84, %c0_85] : memref<2x1xf32, #tpu.memory_space<vmem>>, vector<2x1xf32>
    tpu.vector_store %arg9[%c0_84, %c0_85], %350 {strides = array<i32>} : memref<2x1xf32, #tpu.memory_space<vmem>>, vector<2x1xf32>,
    %c0_86 = arith.constant 0 : index
    %c0_87 = arith.constant 0 : index
    %c0_88 = arith.constant 0 : index
    %352 = vector.load %arg3[%c0_86, %c0_87, %c0_88] : memref<3x2x16xf32, #tpu.memory_space<vmem>>, vector<1x2x16xf32>
    %353 = vector.shape_cast %352 : vector<1x2x16xf32> to vector<2x16xf32>
    %c0_i32_89 = arith.constant 0 : i32
    %354 = vector.broadcast %c0_i32_89 : i32 to vector<2x16xi32>
    %c1_90 = arith.constant 1 : index
    %c0_91 = arith.constant 0 : index
    %c0_92 = arith.constant 0 : index
    %355 = vector.load %arg3[%c1_90, %c0_91, %c0_92] : memref<3x2x16xf32, #tpu.memory_space<vmem>>, vector<1x2x16xf32>
    %356 = vector.shape_cast %355 : vector<1x2x16xf32> to vector<2x16xf32>
    %357 = arith.cmpf ogt, %356, %353 : vector<2x16xf32>
    %358 = arith.select %357, %356, %353 : vector<2x16xi1>, vector<2x16xf32>
    %c1_i32_93 = arith.constant 1 : i32
    %359 = vector.broadcast %c1_i32_93 : i32 to vector<2x16xi32>
    %360 = arith.select %357, %359, %354 : vector<2x16xi1>, vector<2x16xi32>
    %c2_94 = arith.constant 2 : index
    %c0_95 = arith.constant 0 : index
    %c0_96 = arith.constant 0 : index
    %361 = vector.load %arg3[%c2_94, %c0_95, %c0_96] : memref<3x2x16xf32, #tpu.memory_space<vmem>>, vector<1x2x16xf32>
    %362 = vector.shape_cast %361 : vector<1x2x16xf32> to vector<2x16xf32>
    %363 = arith.cmpf ogt, %362, %358 : vector<2x16xf32>
    %c2_i32_97 = arith.constant 2 : i32
    %364 = vector.broadcast %c2_i32_97 : i32 to vector<2x16xi32>
    %365 = arith.select %363, %364, %360 : vector<2x16xi1>, vector<2x16xi32>
    %c0_98 = arith.constant 0 : index
    %c0_99 = arith.constant 0 : index
    %366 = vector.load %arg10[%c0_98, %c0_99] : memref<2x16xi32, #tpu.memory_space<vmem>>, vector<2x16xi32>
    tpu.vector_store %arg10[%c0_98, %c0_99], %365 {strides = array<i32>} : memref<2x16xi32, #tpu.memory_space<vmem>>, vector<2x16xi32>,
    return
  }
  func.func @transform_0(%arg0: i32) -> (i32, i32, i32) {
    %c0_i32 = arith.constant 0 : i32
    %c0_i32_0 = arith.constant 0 : i32
    %c0_i32_1 = arith.constant 0 : i32
    return %c0_i32, %arg0, %c0_i32_0 : i32, i32, i32
  }
  func.func @transform_1(%arg0: i32) -> (i32, i32, i32) {
    %c0_i32 = arith.constant 0 : i32
    %c0_i32_0 = arith.constant 0 : i32
    %c0_i32_1 = arith.constant 0 : i32
    return %c0_i32, %arg0, %c0_i32_0 : i32, i32, i32
  }
  func.func @transform_2(%arg0: i32) -> (i32, i32, i32) {
    %c0_i32 = arith.constant 0 : i32
    %c0_i32_0 = arith.constant 0 : i32
    %c0_i32_1 = arith.constant 0 : i32
    return %c0_i32, %arg0, %c0_i32_0 : i32, i32, i32
  }
  func.func @transform_3(%arg0: i32) -> (i32, i32, i32) {
    %c0_i32 = arith.constant 0 : i32
    %c0_i32_0 = arith.constant 0 : i32
    %c0_i32_1 = arith.constant 0 : i32
    return %arg0, %c0_i32, %c0_i32_0 : i32, i32, i32
  }
  func.func @transform_4(%arg0: i32) -> (i32, i32) {
    %c0_i32 = arith.constant 0 : i32
    %c0_i32_0 = arith.constant 0 : i32
    %c0_i32_1 = arith.constant 0 : i32
    return %c0_i32, %c0_i32_0 : i32, i32
  }
  func.func @transform_5(%arg0: i32) -> (i32, i32) {
    %c0_i32 = arith.constant 0 : i32
    %c0_i32_0 = arith.constant 0 : i32
    %c0_i32_1 = arith.constant 0 : i32
    return %c0_i32, %c0_i32_0 : i32, i32
  }
  func.func @transform_6(%arg0: i32) -> (i32, i32) {
    %c0_i32 = arith.constant 0 : i32
    %c0_i32_0 = arith.constant 0 : i32
    %c0_i32_1 = arith.constant 0 : i32
    return %c0_i32, %c0_i32_0 : i32, i32
  }
  func.func @transform_7(%arg0: i32) -> i32 {
    %c0_i32 = arith.constant 0 : i32
    %c0_i32_0 = arith.constant 0 : i32
    return %c0_i32 : i32
  }
  func.func @transform_8(%arg0: i32) -> (i32, i32) {
    %c0_i32 = arith.constant 0 : i32
    %c0_i32_0 = arith.constant 0 : i32
    return %arg0, %c0_i32 : i32, i32
  }
  func.func @transform_9(%arg0: i32) -> (i32, i32) {
    %c0_i32 = arith.constant 0 : i32
    %c0_i32_0 = arith.constant 0 : i32
    return %arg0, %c0_i32 : i32, i32
  }
}

</mosaic_0001>

<llo_original>
// kernel: tpu_custom_call.1
$region0: #{tpu_custom_call.1}
  #allocation0 [shape = 'u32[]', space=smem, size = 0x4, offset = 0x4, fixed_abs, tag = 'smem constant byte address 0x4 - core index']
  #allocation1 [shape = 'u32[144,128]{1,0:T(1,128)}', space=vmem, size = 0x12000, scoped, tag = 'internal scratch']
  %s0 = inlined_call_operand.vmem [shape: f32[16,2,3], index: 0, kind: input, shape index: {}]
  %s1 = inlined_call_operand.vmem [shape: f32[3,2,16], index: 1, kind: input, shape index: {}]
  %s2 = inlined_call_operand.vmem [shape: f32[3,2,16], index: 2, kind: input, shape index: {}]
  %s3 = inlined_call_operand.vmem [shape: s32[2,2,16], index: 3, kind: input, shape index: {}]
  %s4 = inlined_call_operand.vmem [shape: f32[3,3], index: 4, kind: input, shape index: {}]
  %s5 = inlined_call_operand.vmem [shape: f32[1,3], index: 5, kind: input, shape index: {}]
  %s6 = inlined_call_operand.vmem [shape: f32[1,3], index: 6, kind: input, shape index: {}]
  %s7 = inlined_call_operand.vmem [shape: f32[8], index: 7, kind: input, shape index: {}]
  %s8 = inlined_call_operand.vmem [shape: f32[2,1], index: 8, kind: output, shape index: {0}]
  %s9 = inlined_call_operand.hbm [shape: s32[2,16], index: 9, kind: output, shape index: {1}]
  %10 = xla_tuple %s8, %s9
  %s11 = sld [smem:[#allocation0]]
  $region54: #{tpu_custom_call.1} parent=0
    _
  %s13 = ssub.s32 1, %s11
  %s14 = scalar_select 0, %s13, %s11
  $region1: #{tpu_custom_call.1} parent=0
    #allocation2 [shape = 'u8[512]{0}', space=smem, size = 0x200, scoped, tag = 'input window, operand 7, single buffered']
    #allocation3 [shape = 's32[1]{0}', space=sflag, size = 0x4, scoped, tag = 'scoped memory for tpu_custom_call.1']
    #allocation4 [shape = 's32[1]{0}', space=sflag, size = 0x4, scoped, tag = 'scoped memory for tpu_custom_call.1']
    #allocation5 [shape = 'u8[1024]{0}', space=vmem, size = 0x400, scoped, tag = 'output window, operand 1, single buffered']
    %15 = vsyncpa [#allocation4], 0
    %16 = vsyncpa [#allocation3], 0
    // Predicated region
    $region2: #{tpu_custom_call.1} parent=1 // pred_check
      _
    $region3: #{tpu_custom_call.1} parent=1 // pred_check_branch
      %18 = sbr.rel (0) target = $region5
    $region4: #{tpu_custom_call.1} parent=1 // pred_region
      _
    $region5: #{tpu_custom_call.1} parent=1 // pred_fallthru
      _
    // Predicated region
    $region6: #{tpu_custom_call.1} parent=1 // pred_check
      _
    $region7: #{tpu_custom_call.1} parent=1 // pred_check_branch
      %20 = sbr.rel (0) target = $region9
    $region8: #{tpu_custom_call.1} parent=1 // pred_region
      _
    $region9: #{tpu_custom_call.1} parent=1 // pred_fallthru
      _
    // Predicated region
    $region10: #{tpu_custom_call.1} parent=1 // pred_check
      _
    $region11: #{tpu_custom_call.1} parent=1 // pred_check_branch
      %22 = sbr.rel (0) target = $region13
    $region12: #{tpu_custom_call.1} parent=1 // pred_region
      _
    $region13: #{tpu_custom_call.1} parent=1 // pred_fallthru
      _
    // Predicated region
    $region14: #{tpu_custom_call.1} parent=1 // pred_check
      _
    $region15: #{tpu_custom_call.1} parent=1 // pred_check_branch
      %24 = sbr.rel (0) target = $region17
    $region16: #{tpu_custom_call.1} parent=1 // pred_region
      _
    $region17: #{tpu_custom_call.1} parent=1 // pred_fallthru
      _
    // Predicated region
    $region18: #{tpu_custom_call.1} parent=1 // pred_check
      _
    $region19: #{tpu_custom_call.1} parent=1 // pred_check_branch
      %26 = sbr.rel (0) target = $region21
    $region20: #{tpu_custom_call.1} parent=1 // pred_region
      _
    $region21: #{tpu_custom_call.1} parent=1 // pred_fallthru
      _
    // Predicated region
    $region22: #{tpu_custom_call.1} parent=1 // pred_check
      _
    $region23: #{tpu_custom_call.1} parent=1 // pred_check_branch
      %28 = sbr.rel (0) target = $region25
    $region24: #{tpu_custom_call.1} parent=1 // pred_region
      _
    $region25: #{tpu_custom_call.1} parent=1 // pred_fallthru
      _
    // Predicated region
    $region26: #{tpu_custom_call.1} parent=1 // pred_check
      _
    $region27: #{tpu_custom_call.1} parent=1 // pred_check_branch
      %30 = sbr.rel (0) target = $region29
    $region28: #{tpu_custom_call.1} parent=1 // pred_region
      _
    $region29: #{tpu_custom_call.1} parent=1 // pred_fallthru
      _
    // Predicated region
    $region30: #{tpu_custom_call.1} parent=1 // pred_check
      _
    $region31: #{tpu_custom_call.1} parent=1 // pred_check_branch
      %32 = sbr.rel (0) target = $region33
    $region32: #{tpu_custom_call.1} parent=1 // pred_region
      %s34 = ssub.s32 16, 16
      %35 = vsyncadd [#allocation4], %s34
      %s37 = sshll.u32 %s7, 4
      %s38 = int_to_ptr.vmem [resolvable:$true] %s37
      %40 = dma.vmem_to_smem %s38, 16, [#allocation2], [#allocation4]
    $region33: #{tpu_custom_call.1} parent=1 // pred_fallthru
      _
    // Predicated region
    $region34: #{tpu_custom_call.1} parent=1 // pred_check
      _
    $region35: #{tpu_custom_call.1} parent=1 // pred_check_branch
      %42 = sbr.rel (0) target = $region37
    $region36: #{tpu_custom_call.1} parent=1 // pred_region
      %43 = dma.done [#allocation4], 16
    $region37: #{tpu_custom_call.1} parent=1 // pred_fallthru
      _
    %44 = sfence
    %v45 = vld [vmem:[%s3] sm:$0x3]
    %v46 = vld [vmem:[%s3 + $0x2] sm:$0x3]
    %vm47 = vcmp.eq.s32.totalorder %v45, 1
    %vm48 = vcmp.eq.s32.totalorder %v46, 1
    %v49 = vsel %vm47, 1, 0
    %v50 = vsel %vm48, 1, 0
    %vm51 = vcmask 123904
    %v52 = vsel %vm51, %v49, 0
    %v53 = vrot.slane %v52, 4
    %v54 = vadd.s32 %v52, %v53
    %v55 = vrot.slane %v54, 2
    %v56 = vadd.s32 %v54, %v55
    %v57 = vrot.slane %v56, 1
    %v58 = vadd.s32 %v56, %v57
    %v59 = vsel %vm51, %v50, 0
    %v60 = vrot.slane %v59, 4
    %v61 = vadd.s32 %v59, %v60
    %v62 = vrot.slane %v61, 2
    %v63 = vadd.s32 %v61, %v62
    %v64 = vrot.slane %v63, 1
    %v65 = vadd.s32 %v63, %v64
    %vm66 = vcmp.gt.s32.totalorder %v58, 0
    %vm67 = vcmp.gt.s32.totalorder %v65, 0
    %v68 = vsel %vm66, 1, 0
    %v69 = vsel %vm67, 1, 0
    %v70 = vcvt.s32.f32 %v68
    %v71 = vcvt.s32.f32 %v69
    %s72 = sld [smem:[#allocation2]]
    %s73 = sld [smem:[#allocation2 + $0x1]]
    %s74 = sld [smem:[#allocation2 + $0x2]]
    %s75 = sld [smem:[#allocation2 + $0x3]]
    %s76 = sld [smem:[#allocation2 + $0x4]]
    %s77 = sld [smem:[#allocation2 + $0x5]]
    %s78 = sld [smem:[#allocation2 + $0x6]]
    %s79 = sld [smem:[#allocation2 + $0x7]]
    %v80 = vld [vmem:[%s1] sm:$0x3]
    %s81 = scalar_lea.vmem %s1, 2
    %v82 = vld [vmem:[%s81] sm:$0x3]
    %v83 = vsub.f32 %v82, %v80
    %v85 = vrot.slane %v83, 1
    %v88 = vmul.f32 %v70, %v83
    %v89 = vmul.f32 %v71, %v85
    %v92 = vrot.slane %v89, 7
    %vm93 = vcmask 1041409
    %v94 = vsel %vm93, %v92, %v88
    %v96 = vadd.f32 %v80, %v94
    %v97 = vsel %vm51, %v96, 0.0
    %98 = vadd.xlane.f32.xlu0 %v97
    %v99 = vpop.xlane.xlu0 %98
    %s100 = ssub.f32 %s74, %s72
    %v101 = vstv %s100
    %v102 = vmul.f32 %v70, %v101
    %v103 = vmul.f32 %v71, %v101
    %v104 = vstv %s72
    %v105 = vadd.f32 %v104, %v102
    %v106 = vadd.f32 %v104, %v103
    %s107 = ssub.f32 %s73, %s72
    %v108 = vstv %s107
    %v109 = vmul.f32 %v70, %v108
    %v110 = vmul.f32 %v71, %v108
    %113 = vrot.lane.b32.xlu0 %v109, 127
    %v114 = vpop.permute.xlu0 %113
    %115 = vrot.lane.b32.xlu0 %v110, 127
    %v116 = vpop.permute.xlu0 %115
    %v119 = vadd.f32 %v105, %v114
    %v120 = vadd.f32 %v106, %v116
    %123 = vrot.lane.b32.xlu0 %v70, 127
    %v124 = vpop.permute.xlu0 %123
    %125 = vrot.lane.b32.xlu0 %v71, 127
    %v126 = vpop.permute.xlu0 %125
    %v129 = vmul.f32 %v70, %v124
    %v130 = vmul.f32 %v71, %v126
    %s131 = ssub.f32 %s75, %s74
    %s132 = ssub.f32 %s131, %s73
    %s133 = sadd.f32 %s132, %s72
    %v134 = vstv %s133
    %v135 = vmul.f32 %v129, %v134
    %v136 = vmul.f32 %v130, %v134
    %v137 = vadd.f32 %v119, %v135
    %v138 = vadd.f32 %v120, %v136
    %v141 = vrot.slane %v138, 7
    %v142 = vsel %vm93, %v141, %v137
    %vm144 = vcmask 115712
    %v145 = vsel %vm144, %v142, 0.0
    %146 = vadd.xlane.f32.xlu0 %v145
    %v147 = vpop.xlane.xlu0 %146
    %s148 = ssub.f32 %s77, %s76
    %v149 = vstv %s148
    %v150 = vmul.f32 %v70, %v149
    %v151 = vmul.f32 %v71, %v149
    %v152 = vstv %s76
    %v153 = vadd.f32 %v152, %v150
    %v154 = vadd.f32 %v152, %v151
    %s155 = ssub.f32 %s79, %s78
    %v156 = vstv %s155
    %v157 = vmul.f32 %v70, %v156
    %v158 = vmul.f32 %v71, %v156
    %v159 = vstv %s78
    %v160 = vadd.f32 %v159, %v157
    %v161 = vadd.f32 %v159, %v158
    %v162 = vadd.f32 %v99, %v147
    %v165 = vsel %vm93, %v154, %v153
    %v167 = vadd.f32 %v162, %v165
    %v170 = vsel %vm93, %v161, %v160
    %171 = vrot.lane.b32.xlu0 %v170, 113
    %v172 = vpop.permute.xlu0 %171
    %v174 = vadd.f32 %v167, %v172
    %v175 = vld [vmem:[%s5] sm:$0x1]
    %v176 = vld [vmem:[%s6] sm:$0x1]
    %v177 = vld [vmem:[%s4] sm:$0x7]
    %v178 = vld [vmem:[%s0] sm:$0x3]
    %v180 = vlaneseq
    %v181 = vshrl.u32 %v180, 7
    %v182 = vsub.s32 0, %v181
    %v183 = vrot.slane %v175, %v182
    %v185 = vadd.f32 %v183, %v178
    %s186 = scalar_lea.vmem %s0, 2
    %v187 = vld [vmem:[%s186] sm:$0x3]
    %v188 = vlaneseq
    %v189 = vshrl.u32 %v188, 7
    %v190 = vsub.s32 0, %v189
    %v191 = vrot.slane %v185, %v190
    %193 = vbcast.lane.b32.xlu0 %v191, 256
    %v194 = vpop.permute.xlu0 %193
    %v195 = vlaneseq
    %v196 = vshrl.u32 %v195, 7
    %v197 = vsub.s32 1, %v196
    %v198 = vrot.slane %v185, %v197
    %200 = vbcast.lane.b32.xlu0 %v198, 256
    %v201 = vpop.permute.xlu0 %200
    %v204 = vunpack.c.l.s4 1966171168
    %v205 = vunpack.c.0.s8 %v204
    %v206 = vlaneseq
    %v207 = vshrl.u32 %v206, 7
    %v208 = vsub.s32 %v205, %v207
    %v209 = vrot.slane %v187, %v208
    %v210 = vcombine.high %v209, %v209
    %v212 = vunpack.c.l.s4 1966171168
    %v213 = vunpack.c.0.s8 %v212
    %v214 = vlaneseq
    %v215 = vshrl.u32 %v214, 7
    %v216 = vsub.s32 %v213, %v215
    %v217 = vrot.slane %v209, %v216
    %v219 = vunpack.c.l.s4 1966171168
    %v220 = vunpack.c.0.s8 %v219
    %v221 = vlaneseq
    %v222 = vshrl.u32 %v221, 7
    %v223 = vsub.s32 %v220, %v222
    %v224 = vrot.slane %v210, %v223
    %v225 = vlaneseq
    %v226 = vshrl.u32 %v225, 7
    %v227 = vsub.s32 0, %v226
    %v228 = vrot.slane %v217, %v227
    %v229 = vlaneseq
    %v230 = vshrl.u32 %v229, 7
    %v231 = vsub.s32 0, %v230
    %v232 = vrot.slane %v224, %v231
    %v235 = vadd.f32 %v194, %v228
    %v236 = vadd.f32 %v201, %v232
    %v237 = vadd.f32 %v235, %v177
    %v238 = vadd.f32 %v236, %v177
    %vm239 = vcmask 18432
    %v240 = vsel %vm239, %v237, -inf
    %v241 = vrot.slane %v240, 4
    %v242 = vmax.f32 %v240, %v241
    %v243 = vrot.slane %v242, 2
    %v244 = vmax.f32 %v242, %v243
    %v245 = vrot.slane %v244, 1
    %v246 = vmax.f32 %v244, %v245
    %v247 = vsel %vm239, %v238, -inf
    %v248 = vrot.slane %v247, 4
    %v249 = vmax.f32 %v247, %v248
    %v250 = vrot.slane %v249, 2
    %v251 = vmax.f32 %v249, %v250
    %v252 = vrot.slane %v251, 1
    %v253 = vmax.f32 %v251, %v252
    %v254 = vsub.f32 %v237, %v246
    %v255 = vsub.f32 %v238, %v253
    %v256 = vmul.f32 %v254, 1.442695
    %v257 = vpow.pop %v256
    %v258 = vmul.f32 %v255, 1.442695
    %v259 = vpow.pop %v258
    %v260 = vsel %vm239, %v257, 0.0
    %v261 = vrot.slane %v260, 4
    %v262 = vadd.f32 %v260, %v261
    %v263 = vrot.slane %v262, 2
    %v264 = vadd.f32 %v262, %v263
    %v265 = vrot.slane %v264, 1
    %v266 = vadd.f32 %v264, %v265
    %v267 = vsel %vm239, %v259, 0.0
    %v268 = vrot.slane %v267, 4
    %v269 = vadd.f32 %v267, %v268
    %v270 = vrot.slane %v269, 2
    %v271 = vadd.f32 %v269, %v270
    %v272 = vrot.slane %v271, 1
    %v273 = vadd.f32 %v271, %v272
    %v274 = vlog2.pop %v266
    %v275 = vmul.f32 %v274, 0.6931472
    %v276 = vlog2.pop %v273
    %v277 = vmul.f32 %v276, 0.6931472
    %v278 = vadd.f32 %v246, %v275
    %v279 = vadd.f32 %v253, %v277
    %s280 = scalar_lea.vmem %s0, 4
    %v281 = vld [vmem:[%s280] sm:$0x3]
    %283 = vbcast.lane.b32.xlu0 %v278, 256
    %v284 = vpop.permute.xlu0 %283
    %286 = vbcast.lane.b32.xlu0 %v279, 256
    %v287 = vpop.permute.xlu0 %286
    %v290 = vunpack.c.l.s4 1966171168
    %v291 = vunpack.c.0.s8 %v290
    %v292 = vlaneseq
    %v293 = vshrl.u32 %v292, 7
    %v294 = vsub.s32 %v291, %v293
    %v295 = vrot.slane %v281, %v294
    %v296 = vcombine.high %v295, %v295
    %v298 = vunpack.c.l.s4 1966171168
    %v299 = vunpack.c.0.s8 %v298
    %v300 = vlaneseq
    %v301 = vshrl.u32 %v300, 7
    %v302 = vsub.s32 %v299, %v301
    %v303 = vrot.slane %v295, %v302
    %v305 = vunpack.c.l.s4 1966171168
    %v306 = vunpack.c.0.s8 %v305
    %v307 = vlaneseq
    %v308 = vshrl.u32 %v307, 7
    %v309 = vsub.s32 %v306, %v308
    %v310 = vrot.slane %v296, %v309
    %v311 = vlaneseq
    %v312 = vshrl.u32 %v311, 7
    %v313 = vsub.s32 0, %v312
    %v314 = vrot.slane %v303, %v313
    %v315 = vlaneseq
    %v316 = vshrl.u32 %v315, 7
    %v317 = vsub.s32 0, %v316
    %v318 = vrot.slane %v310, %v317
    %v321 = vadd.f32 %v284, %v314
    %v322 = vadd.f32 %v287, %v318
    %v323 = vadd.f32 %v321, %v177
    %v324 = vadd.f32 %v322, %v177
    %v325 = vsel %vm239, %v323, -inf
    %v326 = vrot.slane %v325, 4
    %v327 = vmax.f32 %v325, %v326
    %v328 = vrot.slane %v327, 2
    %v329 = vmax.f32 %v327, %v328
    %v330 = vrot.slane %v329, 1
    %v331 = vmax.f32 %v329, %v330
    %v332 = vsel %vm239, %v324, -inf
    %v333 = vrot.slane %v332, 4
    %v334 = vmax.f32 %v332, %v333
    %v335 = vrot.slane %v334, 2
    %v336 = vmax.f32 %v334, %v335
    %v337 = vrot.slane %v336, 1
    %v338 = vmax.f32 %v336, %v337
    %v339 = vsub.f32 %v323, %v331
    %v340 = vsub.f32 %v324, %v338
    %v341 = vmul.f32 %v339, 1.442695
    %v342 = vpow.pop %v341
    %v343 = vmul.f32 %v340, 1.442695
    %v344 = vpow.pop %v343
    %v345 = vsel %vm239, %v342, 0.0
    %v346 = vrot.slane %v345, 4
    %v347 = vadd.f32 %v345, %v346
    %v348 = vrot.slane %v347, 2
    %v349 = vadd.f32 %v347, %v348
    %v350 = vrot.slane %v349, 1
    %v351 = vadd.f32 %v349, %v350
    %v352 = vsel %vm239, %v344, 0.0
    %v353 = vrot.slane %v352, 4
    %v354 = vadd.f32 %v352, %v353
    %v355 = vrot.slane %v354, 2
    %v356 = vadd.f32 %v354, %v355
    %v357 = vrot.slane %v356, 1
    %v358 = vadd.f32 %v356, %v357
    %v359 = vlog2.pop %v351
    %v360 = vmul.f32 %v359, 0.6931472
    %v361 = vlog2.pop %v358
    %v362 = vmul.f32 %v361, 0.6931472
    %v363 = vadd.f32 %v331, %v360
    %v364 = vadd.f32 %v338, %v362
    %s365 = scalar_lea.vmem %s0, 6
    %v366 = vld [vmem:[%s365] sm:$0x3]
    %368 = vbcast.lane.b32.xlu0 %v363, 256
    %v369 = vpop.permute.xlu0 %368
    %371 = vbcast.lane.b32.xlu0 %v364, 256
    %v372 = vpop.permute.xlu0 %371
    %v375 = vunpack.c.l.s4 1966171168
    %v376 = vunpack.c.0.s8 %v375
    %v377 = vlaneseq
    %v378 = vshrl.u32 %v377, 7
    %v379 = vsub.s32 %v376, %v378
    %v380 = vrot.slane %v366, %v379
    %v381 = vcombine.high %v380, %v380
    %v383 = vunpack.c.l.s4 1966171168
    %v384 = vunpack.c.0.s8 %v383
    %v385 = vlaneseq
    %v386 = vshrl.u32 %v385, 7
    %v387 = vsub.s32 %v384, %v386
    %v388 = vrot.slane %v380, %v387
    %v390 = vunpack.c.l.s4 1966171168
    %v391 = vunpack.c.0.s8 %v390
    %v392 = vlaneseq
    %v393 = vshrl.u32 %v392, 7
    %v394 = vsub.s32 %v391, %v393
    %v395 = vrot.slane %v381, %v394
    %v396 = vlaneseq
    %v397 = vshrl.u32 %v396, 7
    %v398 = vsub.s32 0, %v397
    %v399 = vrot.slane %v388, %v398
    %v400 = vlaneseq
    %v401 = vshrl.u32 %v400, 7
    %v402 = vsub.s32 0, %v401
    %v403 = vrot.slane %v395, %v402
    %v406 = vadd.f32 %v369, %v399
    %v407 = vadd.f32 %v372, %v403
    %v408 = vadd.f32 %v406, %v177
    %v409 = vadd.f32 %v407, %v177
    %v410 = vsel %vm239, %v408, -inf
    %v411 = vrot.slane %v410, 4
    %v412 = vmax.f32 %v410, %v411
    %v413 = vrot.slane %v412, 2
    %v414 = vmax.f32 %v412, %v413
    %v415 = vrot.slane %v414, 1
    %v416 = vmax.f32 %v414, %v415
    %v417 = vsel %vm239, %v409, -inf
    %v418 = vrot.slane %v417, 4
    %v419 = vmax.f32 %v417, %v418
    %v420 = vrot.slane %v419, 2
    %v421 = vmax.f32 %v419, %v420
    %v422 = vrot.slane %v421, 1
    %v423 = vmax.f32 %v421, %v422
    %v424 = vsub.f32 %v408, %v416
    %v425 = vsub.f32 %v409, %v423
    %v426 = vmul.f32 %v424, 1.442695
    %v427 = vpow.pop %v426
    %v428 = vmul.f32 %v425, 1.442695
    %v429 = vpow.pop %v428
    %v430 = vsel %vm239, %v427, 0.0
    %v431 = vrot.slane %v430, 4
    %v432 = vadd.f32 %v430, %v431
    %v433 = vrot.slane %v432, 2
    %v434 = vadd.f32 %v432, %v433
    %v435 = vrot.slane %v434, 1
    %v436 = vadd.f32 %v434, %v435
    %v437 = vsel %vm239, %v429, 0.0
    %v438 = vrot.slane %v437, 4
    %v439 = vadd.f32 %v437, %v438
    %v440 = vrot.slane %v439, 2
    %v441 = vadd.f32 %v439, %v440
    %v442 = vrot.slane %v441, 1
    %v443 = vadd.f32 %v441, %v442
    %v444 = vlog2.pop %v436
    %v445 = vmul.f32 %v444, 0.6931472
    %v446 = vlog2.pop %v443
    %v447 = vmul.f32 %v446, 0.6931472
    %v448 = vadd.f32 %v416, %v445
    %v449 = vadd.f32 %v423, %v447
    %s450 = scalar_lea.vmem %s0, 8
    %v451 = vld [vmem:[%s450] sm:$0x3]
    %453 = vbcast.lane.b32.xlu0 %v448, 256
    %v454 = vpop.permute.xlu0 %453
    %456 = vbcast.lane.b32.xlu0 %v449, 256
    %v457 = vpop.permute.xlu0 %456
    %v460 = vunpack.c.l.s4 1966171168
    %v461 = vunpack.c.0.s8 %v460
    %v462 = vlaneseq
    %v463 = vshrl.u32 %v462, 7
    %v464 = vsub.s32 %v461, %v463
    %v465 = vrot.slane %v451, %v464
    %v466 = vcombine.high %v465, %v465
    %v468 = vunpack.c.l.s4 1966171168
    %v469 = vunpack.c.0.s8 %v468
    %v470 = vlaneseq
    %v471 = vshrl.u32 %v470, 7
    %v472 = vsub.s32 %v469, %v471
    %v473 = vrot.slane %v465, %v472
    %v475 = vunpack.c.l.s4 1966171168
    %v476 = vunpack.c.0.s8 %v475
    %v477 = vlaneseq
    %v478 = vshrl.u32 %v477, 7
    %v479 = vsub.s32 %v476, %v478
    %v480 = vrot.slane %v466, %v479
    %v481 = vlaneseq
    %v482 = vshrl.u32 %v481, 7
    %v483 = vsub.s32 0, %v482
    %v484 = vrot.slane %v473, %v483
    %v485 = vlaneseq
    %v486 = vshrl.u32 %v485, 7
    %v487 = vsub.s32 0, %v486
    %v488 = vrot.slane %v480, %v487
    %v491 = vadd.f32 %v454, %v484
    %v492 = vadd.f32 %v457, %v488
    %v493 = vadd.f32 %v491, %v177
    %v494 = vadd.f32 %v492, %v177
    %v495 = vsel %vm239, %v493, -inf
    %v496 = vrot.slane %v495, 4
    %v497 = vmax.f32 %v495, %v496
    %v498 = vrot.slane %v497, 2
    %v499 = vmax.f32 %v497, %v498
    %v500 = vrot.slane %v499, 1
    %v501 = vmax.f32 %v499, %v500
    %v502 = vsel %vm239, %v494, -inf
    %v503 = vrot.slane %v502, 4
    %v504 = vmax.f32 %v502, %v503
    %v505 = vrot.slane %v504, 2
    %v506 = vmax.f32 %v504, %v505
    %v507 = vrot.slane %v506, 1
    %v508 = vmax.f32 %v506, %v507
    %v509 = vsub.f32 %v493, %v501
    %v510 = vsub.f32 %v494, %v508
    %v511 = vmul.f32 %v509, 1.442695
    %v512 = vpow.pop %v511
    %v513 = vmul.f32 %v510, 1.442695
    %v514 = vpow.pop %v513
    %v515 = vsel %vm239, %v512, 0.0
    %v516 = vrot.slane %v515, 4
    %v517 = vadd.f32 %v515, %v516
    %v518 = vrot.slane %v517, 2
    %v519 = vadd.f32 %v517, %v518
    %v520 = vrot.slane %v519, 1
    %v521 = vadd.f32 %v519, %v520
    %v522 = vsel %vm239, %v514, 0.0
    %v523 = vrot.slane %v522, 4
    %v524 = vadd.f32 %v522, %v523
    %v525 = vrot.slane %v524, 2
    %v526 = vadd.f32 %v524, %v525
    %v527 = vrot.slane %v526, 1
    %v528 = vadd.f32 %v526, %v527
    %v529 = vlog2.pop %v521
    %v530 = vmul.f32 %v529, 0.6931472
    %v531 = vlog2.pop %v528
    %v532 = vmul.f32 %v531, 0.6931472
    %v533 = vadd.f32 %v501, %v530
    %v534 = vadd.f32 %v508, %v532
    %s535 = scalar_lea.vmem %s0, 10
    %v536 = vld [vmem:[%s535] sm:$0x3]
    %538 = vbcast.lane.b32.xlu0 %v533, 256
    %v539 = vpop.permute.xlu0 %538
    %541 = vbcast.lane.b32.xlu0 %v534, 256
    %v542 = vpop.permute.xlu0 %541
    %v545 = vunpack.c.l.s4 1966171168
    %v546 = vunpack.c.0.s8 %v545
    %v547 = vlaneseq
    %v548 = vshrl.u32 %v547, 7
    %v549 = vsub.s32 %v546, %v548
    %v550 = vrot.slane %v536, %v549
    %v551 = vcombine.high %v550, %v550
    %v553 = vunpack.c.l.s4 1966171168
    %v554 = vunpack.c.0.s8 %v553
    %v555 = vlaneseq
    %v556 = vshrl.u32 %v555, 7
    %v557 = vsub.s32 %v554, %v556
    %v558 = vrot.slane %v550, %v557
    %v560 = vunpack.c.l.s4 1966171168
    %v561 = vunpack.c.0.s8 %v560
    %v562 = vlaneseq
    %v563 = vshrl.u32 %v562, 7
    %v564 = vsub.s32 %v561, %v563
    %v565 = vrot.slane %v551, %v564
    %v566 = vlaneseq
    %v567 = vshrl.u32 %v566, 7
    %v568 = vsub.s32 0, %v567
    %v569 = vrot.slane %v558, %v568
    %v570 = vlaneseq
    %v571 = vshrl.u32 %v570, 7
    %v572 = vsub.s32 0, %v571
    %v573 = vrot.slane %v565, %v572
    %v576 = vadd.f32 %v539, %v569
    %v577 = vadd.f32 %v542, %v573
    %v578 = vadd.f32 %v576, %v177
    %v579 = vadd.f32 %v577, %v177
    %v580 = vsel %vm239, %v578, -inf
    %v581 = vrot.slane %v580, 4
    %v582 = vmax.f32 %v580, %v581
    %v583 = vrot.slane %v582, 2
    %v584 = vmax.f32 %v582, %v583
    %v585 = vrot.slane %v584, 1
    %v586 = vmax.f32 %v584, %v585
    %v587 = vsel %vm239, %v579, -inf
    %v588 = vrot.slane %v587, 4
    %v589 = vmax.f32 %v587, %v588
    %v590 = vrot.slane %v589, 2
    %v591 = vmax.f32 %v589, %v590
    %v592 = vrot.slane %v591, 1
    %v593 = vmax.f32 %v591, %v592
    %v594 = vsub.f32 %v578, %v586
    %v595 = vsub.f32 %v579, %v593
    %v596 = vmul.f32 %v594, 1.442695
    %v597 = vpow.pop %v596
    %v598 = vmul.f32 %v595, 1.442695
    %v599 = vpow.pop %v598
    %v600 = vsel %vm239, %v597, 0.0
    %v601 = vrot.slane %v600, 4
    %v602 = vadd.f32 %v600, %v601
    %v603 = vrot.slane %v602, 2
    %v604 = vadd.f32 %v602, %v603
    %v605 = vrot.slane %v604, 1
    %v606 = vadd.f32 %v604, %v605
    %v607 = vsel %vm239, %v599, 0.0
    %v608 = vrot.slane %v607, 4
    %v609 = vadd.f32 %v607, %v608
    %v610 = vrot.slane %v609, 2
    %v611 = vadd.f32 %v609, %v610
    %v612 = vrot.slane %v611, 1
    %v613 = vadd.f32 %v611, %v612
    %v614 = vlog2.pop %v606
    %v615 = vmul.f32 %v614, 0.6931472
    %v616 = vlog2.pop %v613
    %v617 = vmul.f32 %v616, 0.6931472
    %v618 = vadd.f32 %v586, %v615
    %v619 = vadd.f32 %v593, %v617
    %s620 = scalar_lea.vmem %s0, 12
    %v621 = vld [vmem:[%s620] sm:$0x3]
    %623 = vbcast.lane.b32.xlu0 %v618, 256
    %v624 = vpop.permute.xlu0 %623
    %626 = vbcast.lane.b32.xlu0 %v619, 256
    %v627 = vpop.permute.xlu0 %626
    %v630 = vunpack.c.l.s4 1966171168
    %v631 = vunpack.c.0.s8 %v630
    %v632 = vlaneseq
    %v633 = vshrl.u32 %v632, 7
    %v634 = vsub.s32 %v631, %v633
    %v635 = vrot.slane %v621, %v634
    %v636 = vcombine.high %v635, %v635
    %v638 = vunpack.c.l.s4 1966171168
    %v639 = vunpack.c.0.s8 %v638
    %v640 = vlaneseq
    %v641 = vshrl.u32 %v640, 7
    %v642 = vsub.s32 %v639, %v641
    %v643 = vrot.slane %v635, %v642
    %v645 = vunpack.c.l.s4 1966171168
    %v646 = vunpack.c.0.s8 %v645
    %v647 = vlaneseq
    %v648 = vshrl.u32 %v647, 7
    %v649 = vsub.s32 %v646, %v648
    %v650 = vrot.slane %v636, %v649
    %v651 = vlaneseq
    %v652 = vshrl.u32 %v651, 7
    %v653 = vsub.s32 0, %v652
    %v654 = vrot.slane %v643, %v653
    %v655 = vlaneseq
    %v656 = vshrl.u32 %v655, 7
    %v657 = vsub.s32 0, %v656
    %v658 = vrot.slane %v650, %v657
    %v661 = vadd.f32 %v624, %v654
    %v662 = vadd.f32 %v627, %v658
    %v663 = vadd.f32 %v661, %v177
    %v664 = vadd.f32 %v662, %v177
    %v665 = vsel %vm239, %v663, -inf
    %v666 = vrot.slane %v665, 4
    %v667 = vmax.f32 %v665, %v666
    %v668 = vrot.slane %v667, 2
    %v669 = vmax.f32 %v667, %v668
    %v670 = vrot.slane %v669, 1
    %v671 = vmax.f32 %v669, %v670
    %v672 = vsel %vm239, %v664, -inf
    %v673 = vrot.slane %v672, 4
    %v674 = vmax.f32 %v672, %v673
    %v675 = vrot.slane %v674, 2
    %v676 = vmax.f32 %v674, %v675
    %v677 = vrot.slane %v676, 1
    %v678 = vmax.f32 %v676, %v677
    %v679 = vsub.f32 %v663, %v671
    %v680 = vsub.f32 %v664, %v678
    %v681 = vmul.f32 %v679, 1.442695
    %v682 = vpow.pop %v681
    %v683 = vmul.f32 %v680, 1.442695
    %v684 = vpow.pop %v683
    %v685 = vsel %vm239, %v682, 0.0
    %v686 = vrot.slane %v685, 4
    %v687 = vadd.f32 %v685, %v686
    %v688 = vrot.slane %v687, 2
    %v689 = vadd.f32 %v687, %v688
    %v690 = vrot.slane %v689, 1
    %v691 = vadd.f32 %v689, %v690
    %v692 = vsel %vm239, %v684, 0.0
    %v693 = vrot.slane %v692, 4
    %v694 = vadd.f32 %v692, %v693
    %v695 = vrot.slane %v694, 2
    %v696 = vadd.f32 %v694, %v695
    %v697 = vrot.slane %v696, 1
    %v698 = vadd.f32 %v696, %v697
    %v699 = vlog2.pop %v691
    %v700 = vmul.f32 %v699, 0.6931472
    %v701 = vlog2.pop %v698
    %v702 = vmul.f32 %v701, 0.6931472
    %v703 = vadd.f32 %v671, %v700
    %v704 = vadd.f32 %v678, %v702
    %s705 = scalar_lea.vmem %s0, 14
    %v706 = vld [vmem:[%s705] sm:$0x3]
    %708 = vbcast.lane.b32.xlu0 %v703, 256
    %v709 = vpop.permute.xlu0 %708
    %711 = vbcast.lane.b32.xlu0 %v704, 256
    %v712 = vpop.permute.xlu0 %711
    %v715 = vunpack.c.l.s4 1966171168
    %v716 = vunpack.c.0.s8 %v715
    %v717 = vlaneseq
    %v718 = vshrl.u32 %v717, 7
    %v719 = vsub.s32 %v716, %v718
    %v720 = vrot.slane %v706, %v719
    %v721 = vcombine.high %v720, %v720
    %v723 = vunpack.c.l.s4 1966171168
    %v724 = vunpack.c.0.s8 %v723
    %v725 = vlaneseq
    %v726 = vshrl.u32 %v725, 7
    %v727 = vsub.s32 %v724, %v726
    %v728 = vrot.slane %v720, %v727
    %v730 = vunpack.c.l.s4 1966171168
    %v731 = vunpack.c.0.s8 %v730
    %v732 = vlaneseq
    %v733 = vshrl.u32 %v732, 7
    %v734 = vsub.s32 %v731, %v733
    %v735 = vrot.slane %v721, %v734
    %v736 = vlaneseq
    %v737 = vshrl.u32 %v736, 7
    %v738 = vsub.s32 0, %v737
    %v739 = vrot.slane %v728, %v738
    %v740 = vlaneseq
    %v741 = vshrl.u32 %v740, 7
    %v742 = vsub.s32 0, %v741
    %v743 = vrot.slane %v735, %v742
    %v746 = vadd.f32 %v709, %v739
    %v747 = vadd.f32 %v712, %v743
    %v748 = vadd.f32 %v746, %v177
    %v749 = vadd.f32 %v747, %v177
    %v750 = vsel %vm239, %v748, -inf
    %v751 = vrot.slane %v750, 4
    %v752 = vmax.f32 %v750, %v751
    %v753 = vrot.slane %v752, 2
    %v754 = vmax.f32 %v752, %v753
    %v755 = vrot.slane %v754, 1
    %v756 = vmax.f32 %v754, %v755
    %v757 = vsel %vm239, %v749, -inf
    %v758 = vrot.slane %v757, 4
    %v759 = vmax.f32 %v757, %v758
    %v760 = vrot.slane %v759, 2
    %v761 = vmax.f32 %v759, %v760
    %v762 = vrot.slane %v761, 1
    %v763 = vmax.f32 %v761, %v762
    %v764 = vsub.f32 %v748, %v756
    %v765 = vsub.f32 %v749, %v763
    %v766 = vmul.f32 %v764, 1.442695
    %v767 = vpow.pop %v766
    %v768 = vmul.f32 %v765, 1.442695
    %v769 = vpow.pop %v768
    %v770 = vsel %vm239, %v767, 0.0
    %v771 = vrot.slane %v770, 4
    %v772 = vadd.f32 %v770, %v771
    %v773 = vrot.slane %v772, 2
    %v774 = vadd.f32 %v772, %v773
    %v775 = vrot.slane %v774, 1
    %v776 = vadd.f32 %v774, %v775
    %v777 = vsel %vm239, %v769, 0.0
    %v778 = vrot.slane %v777, 4
    %v779 = vadd.f32 %v777, %v778
    %v780 = vrot.slane %v779, 2
    %v781 = vadd.f32 %v779, %v780
    %v782 = vrot.slane %v781, 1
    %v783 = vadd.f32 %v781, %v782
    %v784 = vlog2.pop %v776
    %v785 = vmul.f32 %v784, 0.6931472
    %v786 = vlog2.pop %v783
    %v787 = vmul.f32 %v786, 0.6931472
    %v788 = vadd.f32 %v756, %v785
    %v789 = vadd.f32 %v763, %v787
    %s790 = scalar_lea.vmem %s0, 16
    %v791 = vld [vmem:[%s790] sm:$0x3]
    %793 = vbcast.lane.b32.xlu0 %v788, 256
    %v794 = vpop.permute.xlu0 %793
    %796 = vbcast.lane.b32.xlu0 %v789, 256
    %v797 = vpop.permute.xlu0 %796
    %v800 = vunpack.c.l.s4 1966171168
    %v801 = vunpack.c.0.s8 %v800
    %v802 = vlaneseq
    %v803 = vshrl.u32 %v802, 7
    %v804 = vsub.s32 %v801, %v803
    %v805 = vrot.slane %v791, %v804
    %v806 = vcombine.high %v805, %v805
    %v808 = vunpack.c.l.s4 1966171168
    %v809 = vunpack.c.0.s8 %v808
    %v810 = vlaneseq
    %v811 = vshrl.u32 %v810, 7
    %v812 = vsub.s32 %v809, %v811
    %v813 = vrot.slane %v805, %v812
    %v815 = vunpack.c.l.s4 1966171168
    %v816 = vunpack.c.0.s8 %v815
    %v817 = vlaneseq
    %v818 = vshrl.u32 %v817, 7
    %v819 = vsub.s32 %v816, %v818
    %v820 = vrot.slane %v806, %v819
    %v821 = vlaneseq
    %v822 = vshrl.u32 %v821, 7
    %v823 = vsub.s32 0, %v822
    %v824 = vrot.slane %v813, %v823
    %v825 = vlaneseq
    %v826 = vshrl.u32 %v825, 7
    %v827 = vsub.s32 0, %v826
    %v828 = vrot.slane %v820, %v827
    %v831 = vadd.f32 %v794, %v824
    %v832 = vadd.f32 %v797, %v828
    %v833 = vadd.f32 %v831, %v177
    %v834 = vadd.f32 %v832, %v177
    %v835 = vsel %vm239, %v833, -inf
    %v836 = vrot.slane %v835, 4
    %v837 = vmax.f32 %v835, %v836
    %v838 = vrot.slane %v837, 2
    %v839 = vmax.f32 %v837, %v838
    %v840 = vrot.slane %v839, 1
    %v841 = vmax.f32 %v839, %v840
    %v842 = vsel %vm239, %v834, -inf
    %v843 = vrot.slane %v842, 4
    %v844 = vmax.f32 %v842, %v843
    %v845 = vrot.slane %v844, 2
    %v846 = vmax.f32 %v844, %v845
    %v847 = vrot.slane %v846, 1
    %v848 = vmax.f32 %v846, %v847
    %v849 = vsub.f32 %v833, %v841
    %v850 = vsub.f32 %v834, %v848
    %v851 = vmul.f32 %v849, 1.442695
    %v852 = vpow.pop %v851
    %v853 = vmul.f32 %v850, 1.442695
    %v854 = vpow.pop %v853
    %v855 = vsel %vm239, %v852, 0.0
    %v856 = vrot.slane %v855, 4
    %v857 = vadd.f32 %v855, %v856
    %v858 = vrot.slane %v857, 2
    %v859 = vadd.f32 %v857, %v858
    %v860 = vrot.slane %v859, 1
    %v861 = vadd.f32 %v859, %v860
    %v862 = vsel %vm239, %v854, 0.0
    %v863 = vrot.slane %v862, 4
    %v864 = vadd.f32 %v862, %v863
    %v865 = vrot.slane %v864, 2
    %v866 = vadd.f32 %v864, %v865
    %v867 = vrot.slane %v866, 1
    %v868 = vadd.f32 %v866, %v867
    %v869 = vlog2.pop %v861
    %v870 = vmul.f32 %v869, 0.6931472
    %v871 = vlog2.pop %v868
    %v872 = vmul.f32 %v871, 0.6931472
    %v873 = vadd.f32 %v841, %v870
    %v874 = vadd.f32 %v848, %v872
    %s875 = scalar_lea.vmem %s0, 18
    %v876 = vld [vmem:[%s875] sm:$0x3]
    %878 = vbcast.lane.b32.xlu0 %v873, 256
    %v879 = vpop.permute.xlu0 %878
    %881 = vbcast.lane.b32.xlu0 %v874, 256
    %v882 = vpop.permute.xlu0 %881
    %v885 = vunpack.c.l.s4 1966171168
    %v886 = vunpack.c.0.s8 %v885
    %v887 = vlaneseq
    %v888 = vshrl.u32 %v887, 7
    %v889 = vsub.s32 %v886, %v888
    %v890 = vrot.slane %v876, %v889
    %v891 = vcombine.high %v890, %v890
    %v893 = vunpack.c.l.s4 1966171168
    %v894 = vunpack.c.0.s8 %v893
    %v895 = vlaneseq
    %v896 = vshrl.u32 %v895, 7
    %v897 = vsub.s32 %v894, %v896
    %v898 = vrot.slane %v890, %v897
    %v900 = vunpack.c.l.s4 1966171168
    %v901 = vunpack.c.0.s8 %v900
    %v902 = vlaneseq
    %v903 = vshrl.u32 %v902, 7
    %v904 = vsub.s32 %v901, %v903
    %v905 = vrot.slane %v891, %v904
    %v906 = vlaneseq
    %v907 = vshrl.u32 %v906, 7
    %v908 = vsub.s32 0, %v907
    %v909 = vrot.slane %v898, %v908
    %v910 = vlaneseq
    %v911 = vshrl.u32 %v910, 7
    %v912 = vsub.s32 0, %v911
    %v913 = vrot.slane %v905, %v912
    %v916 = vadd.f32 %v879, %v909
    %v917 = vadd.f32 %v882, %v913
    %v918 = vadd.f32 %v916, %v177
    %v919 = vadd.f32 %v917, %v177
    %v920 = vsel %vm239, %v918, -inf
    %v921 = vrot.slane %v920, 4
    %v922 = vmax.f32 %v920, %v921
    %v923 = vrot.slane %v922, 2
    %v924 = vmax.f32 %v922, %v923
    %v925 = vrot.slane %v924, 1
    %v926 = vmax.f32 %v924, %v925
    %v927 = vsel %vm239, %v919, -inf
    %v928 = vrot.slane %v927, 4
    %v929 = vmax.f32 %v927, %v928
    %v930 = vrot.slane %v929, 2
    %v931 = vmax.f32 %v929, %v930
    %v932 = vrot.slane %v931, 1
    %v933 = vmax.f32 %v931, %v932
    %v934 = vsub.f32 %v918, %v926
    %v935 = vsub.f32 %v919, %v933
    %v936 = vmul.f32 %v934, 1.442695
    %v937 = vpow.pop %v936
    %v938 = vmul.f32 %v935, 1.442695
    %v939 = vpow.pop %v938
    %v940 = vsel %vm239, %v937, 0.0
    %v941 = vrot.slane %v940, 4
    %v942 = vadd.f32 %v940, %v941
    %v943 = vrot.slane %v942, 2
    %v944 = vadd.f32 %v942, %v943
    %v945 = vrot.slane %v944, 1
    %v946 = vadd.f32 %v944, %v945
    %v947 = vsel %vm239, %v939, 0.0
    %v948 = vrot.slane %v947, 4
    %v949 = vadd.f32 %v947, %v948
    %v950 = vrot.slane %v949, 2
    %v951 = vadd.f32 %v949, %v950
    %v952 = vrot.slane %v951, 1
    %v953 = vadd.f32 %v951, %v952
    %v954 = vlog2.pop %v946
    %v955 = vmul.f32 %v954, 0.6931472
    %v956 = vlog2.pop %v953
    %v957 = vmul.f32 %v956, 0.6931472
    %v958 = vadd.f32 %v926, %v955
    %v959 = vadd.f32 %v933, %v957
    %s960 = scalar_lea.vmem %s0, 20
    %v961 = vld [vmem:[%s960] sm:$0x3]
    %963 = vbcast.lane.b32.xlu0 %v958, 256
    %v964 = vpop.permute.xlu0 %963
    %966 = vbcast.lane.b32.xlu0 %v959, 256
    %v967 = vpop.permute.xlu0 %966
    %v970 = vunpack.c.l.s4 1966171168
    %v971 = vunpack.c.0.s8 %v970
    %v972 = vlaneseq
    %v973 = vshrl.u32 %v972, 7
    %v974 = vsub.s32 %v971, %v973
    %v975 = vrot.slane %v961, %v974
    %v976 = vcombine.high %v975, %v975
    %v978 = vunpack.c.l.s4 1966171168
    %v979 = vunpack.c.0.s8 %v978
    %v980 = vlaneseq
    %v981 = vshrl.u32 %v980, 7
    %v982 = vsub.s32 %v979, %v981
    %v983 = vrot.slane %v975, %v982
    %v985 = vunpack.c.l.s4 1966171168
    %v986 = vunpack.c.0.s8 %v985
    %v987 = vlaneseq
    %v988 = vshrl.u32 %v987, 7
    %v989 = vsub.s32 %v986, %v988
    %v990 = vrot.slane %v976, %v989
    %v991 = vlaneseq
    %v992 = vshrl.u32 %v991, 7
    %v993 = vsub.s32 0, %v992
    %v994 = vrot.slane %v983, %v993
    %v995 = vlaneseq
    %v996 = vshrl.u32 %v995, 7
    %v997 = vsub.s32 0, %v996
    %v998 = vrot.slane %v990, %v997
    %v1001 = vadd.f32 %v964, %v994
    %v1002 = vadd.f32 %v967, %v998
    %v1003 = vadd.f32 %v1001, %v177
    %v1004 = vadd.f32 %v1002, %v177
    %v1005 = vsel %vm239, %v1003, -inf
    %v1006 = vrot.slane %v1005, 4
    %v1007 = vmax.f32 %v1005, %v1006
    %v1008 = vrot.slane %v1007, 2
    %v1009 = vmax.f32 %v1007, %v1008
    %v1010 = vrot.slane %v1009, 1
    %v1011 = vmax.f32 %v1009, %v1010
    %v1012 = vsel %vm239, %v1004, -inf
    %v1013 = vrot.slane %v1012, 4
    %v1014 = vmax.f32 %v1012, %v1013
    %v1015 = vrot.slane %v1014, 2
    %v1016 = vmax.f32 %v1014, %v1015
    %v1017 = vrot.slane %v1016, 1
    %v1018 = vmax.f32 %v1016, %v1017
    %v1019 = vsub.f32 %v1003, %v1011
    %v1020 = vsub.f32 %v1004, %v1018
    %v1021 = vmul.f32 %v1019, 1.442695
    %v1022 = vpow.pop %v1021
    %v1023 = vmul.f32 %v1020, 1.442695
    %v1024 = vpow.pop %v1023
    %v1025 = vsel %vm239, %v1022, 0.0
    %v1026 = vrot.slane %v1025, 4
    %v1027 = vadd.f32 %v1025, %v1026
    %v1028 = vrot.slane %v1027, 2
    %v1029 = vadd.f32 %v1027, %v1028
    %v1030 = vrot.slane %v1029, 1
    %v1031 = vadd.f32 %v1029, %v1030
    %v1032 = vsel %vm239, %v1024, 0.0
    %v1033 = vrot.slane %v1032, 4
    %v1034 = vadd.f32 %v1032, %v1033
    %v1035 = vrot.slane %v1034, 2
    %v1036 = vadd.f32 %v1034, %v1035
    %v1037 = vrot.slane %v1036, 1
    %v1038 = vadd.f32 %v1036, %v1037
    %v1039 = vlog2.pop %v1031
    %v1040 = vmul.f32 %v1039, 0.6931472
    %v1041 = vlog2.pop %v1038
    %v1042 = vmul.f32 %v1041, 0.6931472
    %v1043 = vadd.f32 %v1011, %v1040
    %v1044 = vadd.f32 %v1018, %v1042
    %s1045 = scalar_lea.vmem %s0, 22
    %v1046 = vld [vmem:[%s1045] sm:$0x3]
    %1048 = vbcast.lane.b32.xlu0 %v1043, 256
    %v1049 = vpop.permute.xlu0 %1048
    %1051 = vbcast.lane.b32.xlu0 %v1044, 256
    %v1052 = vpop.permute.xlu0 %1051
    %v1055 = vunpack.c.l.s4 1966171168
    %v1056 = vunpack.c.0.s8 %v1055
    %v1057 = vlaneseq
    %v1058 = vshrl.u32 %v1057, 7
    %v1059 = vsub.s32 %v1056, %v1058
    %v1060 = vrot.slane %v1046, %v1059
    %v1061 = vcombine.high %v1060, %v1060
    %v1063 = vunpack.c.l.s4 1966171168
    %v1064 = vunpack.c.0.s8 %v1063
    %v1065 = vlaneseq
    %v1066 = vshrl.u32 %v1065, 7
    %v1067 = vsub.s32 %v1064, %v1066
    %v1068 = vrot.slane %v1060, %v1067
    %v1070 = vunpack.c.l.s4 1966171168
    %v1071 = vunpack.c.0.s8 %v1070
    %v1072 = vlaneseq
    %v1073 = vshrl.u32 %v1072, 7
    %v1074 = vsub.s32 %v1071, %v1073
    %v1075 = vrot.slane %v1061, %v1074
    %v1076 = vlaneseq
    %v1077 = vshrl.u32 %v1076, 7
    %v1078 = vsub.s32 0, %v1077
    %v1079 = vrot.slane %v1068, %v1078
    %v1080 = vlaneseq
    %v1081 = vshrl.u32 %v1080, 7
    %v1082 = vsub.s32 0, %v1081
    %v1083 = vrot.slane %v1075, %v1082
    %v1086 = vadd.f32 %v1049, %v1079
    %v1087 = vadd.f32 %v1052, %v1083
    %v1088 = vadd.f32 %v1086, %v177
    %v1089 = vadd.f32 %v1087, %v177
    %v1090 = vsel %vm239, %v1088, -inf
    %v1091 = vrot.slane %v1090, 4
    %v1092 = vmax.f32 %v1090, %v1091
    %v1093 = vrot.slane %v1092, 2
    %v1094 = vmax.f32 %v1092, %v1093
    %v1095 = vrot.slane %v1094, 1
    %v1096 = vmax.f32 %v1094, %v1095
    %v1097 = vsel %vm239, %v1089, -inf
    %v1098 = vrot.slane %v1097, 4
    %v1099 = vmax.f32 %v1097, %v1098
    %v1100 = vrot.slane %v1099, 2
    %v1101 = vmax.f32 %v1099, %v1100
    %v1102 = vrot.slane %v1101, 1
    %v1103 = vmax.f32 %v1101, %v1102
    %v1104 = vsub.f32 %v1088, %v1096
    %v1105 = vsub.f32 %v1089, %v1103
    %v1106 = vmul.f32 %v1104, 1.442695
    %v1107 = vpow.pop %v1106
    %v1108 = vmul.f32 %v1105, 1.442695
    %v1109 = vpow.pop %v1108
    %v1110 = vsel %vm239, %v1107, 0.0
    %v1111 = vrot.slane %v1110, 4
    %v1112 = vadd.f32 %v1110, %v1111
    %v1113 = vrot.slane %v1112, 2
    %v1114 = vadd.f32 %v1112, %v1113
    %v1115 = vrot.slane %v1114, 1
    %v1116 = vadd.f32 %v1114, %v1115
    %v1117 = vsel %vm239, %v1109, 0.0
    %v1118 = vrot.slane %v1117, 4
    %v1119 = vadd.f32 %v1117, %v1118
    %v1120 = vrot.slane %v1119, 2
    %v1121 = vadd.f32 %v1119, %v1120
    %v1122 = vrot.slane %v1121, 1
    %v1123 = vadd.f32 %v1121, %v1122
    %v1124 = vlog2.pop %v1116
    %v1125 = vmul.f32 %v1124, 0.6931472
    %v1126 = vlog2.pop %v1123
    %v1127 = vmul.f32 %v1126, 0.6931472
    %v1128 = vadd.f32 %v1096, %v1125
    %v1129 = vadd.f32 %v1103, %v1127
    %s1130 = scalar_lea.vmem %s0, 24
    %v1131 = vld [vmem:[%s1130] sm:$0x3]
    %1133 = vbcast.lane.b32.xlu0 %v1128, 256
    %v1134 = vpop.permute.xlu0 %1133
    %1136 = vbcast.lane.b32.xlu0 %v1129, 256
    %v1137 = vpop.permute.xlu0 %1136
    %v1140 = vunpack.c.l.s4 1966171168
    %v1141 = vunpack.c.0.s8 %v1140
    %v1142 = vlaneseq
    %v1143 = vshrl.u32 %v1142, 7
    %v1144 = vsub.s32 %v1141, %v1143
    %v1145 = vrot.slane %v1131, %v1144
    %v1146 = vcombine.high %v1145, %v1145
    %v1148 = vunpack.c.l.s4 1966171168
    %v1149 = vunpack.c.0.s8 %v1148
    %v1150 = vlaneseq
    %v1151 = vshrl.u32 %v1150, 7
    %v1152 = vsub.s32 %v1149, %v1151
    %v1153 = vrot.slane %v1145, %v1152
    %v1155 = vunpack.c.l.s4 1966171168
    %v1156 = vunpack.c.0.s8 %v1155
    %v1157 = vlaneseq
    %v1158 = vshrl.u32 %v1157, 7
    %v1159 = vsub.s32 %v1156, %v1158
    %v1160 = vrot.slane %v1146, %v1159
    %v1161 = vlaneseq
    %v1162 = vshrl.u32 %v1161, 7
    %v1163 = vsub.s32 0, %v1162
    %v1164 = vrot.slane %v1153, %v1163
    %v1165 = vlaneseq
    %v1166 = vshrl.u32 %v1165, 7
    %v1167 = vsub.s32 0, %v1166
    %v1168 = vrot.slane %v1160, %v1167
    %v1171 = vadd.f32 %v1134, %v1164
    %v1172 = vadd.f32 %v1137, %v1168
    %v1173 = vadd.f32 %v1171, %v177
    %v1174 = vadd.f32 %v1172, %v177
    %v1175 = vsel %vm239, %v1173, -inf
    %v1176 = vrot.slane %v1175, 4
    %v1177 = vmax.f32 %v1175, %v1176
    %v1178 = vrot.slane %v1177, 2
    %v1179 = vmax.f32 %v1177, %v1178
    %v1180 = vrot.slane %v1179, 1
    %v1181 = vmax.f32 %v1179, %v1180
    %v1182 = vsel %vm239, %v1174, -inf
    %v1183 = vrot.slane %v1182, 4
    %v1184 = vmax.f32 %v1182, %v1183
    %v1185 = vrot.slane %v1184, 2
    %v1186 = vmax.f32 %v1184, %v1185
    %v1187 = vrot.slane %v1186, 1
    %v1188 = vmax.f32 %v1186, %v1187
    %v1189 = vsub.f32 %v1173, %v1181
    %v1190 = vsub.f32 %v1174, %v1188
    %v1191 = vmul.f32 %v1189, 1.442695
    %v1192 = vpow.pop %v1191
    %v1193 = vmul.f32 %v1190, 1.442695
    %v1194 = vpow.pop %v1193
    %v1195 = vsel %vm239, %v1192, 0.0
    %v1196 = vrot.slane %v1195, 4
    %v1197 = vadd.f32 %v1195, %v1196
    %v1198 = vrot.slane %v1197, 2
    %v1199 = vadd.f32 %v1197, %v1198
    %v1200 = vrot.slane %v1199, 1
    %v1201 = vadd.f32 %v1199, %v1200
    %v1202 = vsel %vm239, %v1194, 0.0
    %v1203 = vrot.slane %v1202, 4
    %v1204 = vadd.f32 %v1202, %v1203
    %v1205 = vrot.slane %v1204, 2
    %v1206 = vadd.f32 %v1204, %v1205
    %v1207 = vrot.slane %v1206, 1
    %v1208 = vadd.f32 %v1206, %v1207
    %v1209 = vlog2.pop %v1201
    %v1210 = vmul.f32 %v1209, 0.6931472
    %v1211 = vlog2.pop %v1208
    %v1212 = vmul.f32 %v1211, 0.6931472
    %v1213 = vadd.f32 %v1181, %v1210
    %v1214 = vadd.f32 %v1188, %v1212
    %s1215 = scalar_lea.vmem %s0, 26
    %v1216 = vld [vmem:[%s1215] sm:$0x3]
    %1218 = vbcast.lane.b32.xlu0 %v1213, 256
    %v1219 = vpop.permute.xlu0 %1218
    %1221 = vbcast.lane.b32.xlu0 %v1214, 256
    %v1222 = vpop.permute.xlu0 %1221
    %v1225 = vunpack.c.l.s4 1966171168
    %v1226 = vunpack.c.0.s8 %v1225
    %v1227 = vlaneseq
    %v1228 = vshrl.u32 %v1227, 7
    %v1229 = vsub.s32 %v1226, %v1228
    %v1230 = vrot.slane %v1216, %v1229
    %v1231 = vcombine.high %v1230, %v1230
    %v1233 = vunpack.c.l.s4 1966171168
    %v1234 = vunpack.c.0.s8 %v1233
    %v1235 = vlaneseq
    %v1236 = vshrl.u32 %v1235, 7
    %v1237 = vsub.s32 %v1234, %v1236
    %v1238 = vrot.slane %v1230, %v1237
    %v1240 = vunpack.c.l.s4 1966171168
    %v1241 = vunpack.c.0.s8 %v1240
    %v1242 = vlaneseq
    %v1243 = vshrl.u32 %v1242, 7
    %v1244 = vsub.s32 %v1241, %v1243
    %v1245 = vrot.slane %v1231, %v1244
    %v1246 = vlaneseq
    %v1247 = vshrl.u32 %v1246, 7
    %v1248 = vsub.s32 0, %v1247
    %v1249 = vrot.slane %v1238, %v1248
    %v1250 = vlaneseq
    %v1251 = vshrl.u32 %v1250, 7
    %v1252 = vsub.s32 0, %v1251
    %v1253 = vrot.slane %v1245, %v1252
    %v1256 = vadd.f32 %v1219, %v1249
    %v1257 = vadd.f32 %v1222, %v1253
    %v1258 = vadd.f32 %v1256, %v177
    %v1259 = vadd.f32 %v1257, %v177
    %v1260 = vsel %vm239, %v1258, -inf
    %v1261 = vrot.slane %v1260, 4
    %v1262 = vmax.f32 %v1260, %v1261
    %v1263 = vrot.slane %v1262, 2
    %v1264 = vmax.f32 %v1262, %v1263
    %v1265 = vrot.slane %v1264, 1
    %v1266 = vmax.f32 %v1264, %v1265
    %v1267 = vsel %vm239, %v1259, -inf
    %v1268 = vrot.slane %v1267, 4
    %v1269 = vmax.f32 %v1267, %v1268
    %v1270 = vrot.slane %v1269, 2
    %v1271 = vmax.f32 %v1269, %v1270
    %v1272 = vrot.slane %v1271, 1
    %v1273 = vmax.f32 %v1271, %v1272
    %v1274 = vsub.f32 %v1258, %v1266
    %v1275 = vsub.f32 %v1259, %v1273
    %v1276 = vmul.f32 %v1274, 1.442695
    %v1277 = vpow.pop %v1276
    %v1278 = vmul.f32 %v1275, 1.442695
    %v1279 = vpow.pop %v1278
    %v1280 = vsel %vm239, %v1277, 0.0
    %v1281 = vrot.slane %v1280, 4
    %v1282 = vadd.f32 %v1280, %v1281
    %v1283 = vrot.slane %v1282, 2
    %v1284 = vadd.f32 %v1282, %v1283
    %v1285 = vrot.slane %v1284, 1
    %v1286 = vadd.f32 %v1284, %v1285
    %v1287 = vsel %vm239, %v1279, 0.0
    %v1288 = vrot.slane %v1287, 4
    %v1289 = vadd.f32 %v1287, %v1288
    %v1290 = vrot.slane %v1289, 2
    %v1291 = vadd.f32 %v1289, %v1290
    %v1292 = vrot.slane %v1291, 1
    %v1293 = vadd.f32 %v1291, %v1292
    %v1294 = vlog2.pop %v1286
    %v1295 = vmul.f32 %v1294, 0.6931472
    %v1296 = vlog2.pop %v1293
    %v1297 = vmul.f32 %v1296, 0.6931472
    %v1298 = vadd.f32 %v1266, %v1295
    %v1299 = vadd.f32 %v1273, %v1297
    %s1300 = scalar_lea.vmem %s0, 28
    %v1301 = vld [vmem:[%s1300] sm:$0x3]
    %1303 = vbcast.lane.b32.xlu0 %v1298, 256
    %v1304 = vpop.permute.xlu0 %1303
    %1306 = vbcast.lane.b32.xlu0 %v1299, 256
    %v1307 = vpop.permute.xlu0 %1306
    %v1310 = vunpack.c.l.s4 1966171168
    %v1311 = vunpack.c.0.s8 %v1310
    %v1312 = vlaneseq
    %v1313 = vshrl.u32 %v1312, 7
    %v1314 = vsub.s32 %v1311, %v1313
    %v1315 = vrot.slane %v1301, %v1314
    %v1316 = vcombine.high %v1315, %v1315
    %v1318 = vunpack.c.l.s4 1966171168
    %v1319 = vunpack.c.0.s8 %v1318
    %v1320 = vlaneseq
    %v1321 = vshrl.u32 %v1320, 7
    %v1322 = vsub.s32 %v1319, %v1321
    %v1323 = vrot.slane %v1315, %v1322
    %v1325 = vunpack.c.l.s4 1966171168
    %v1326 = vunpack.c.0.s8 %v1325
    %v1327 = vlaneseq
    %v1328 = vshrl.u32 %v1327, 7
    %v1329 = vsub.s32 %v1326, %v1328
    %v1330 = vrot.slane %v1316, %v1329
    %v1331 = vlaneseq
    %v1332 = vshrl.u32 %v1331, 7
    %v1333 = vsub.s32 0, %v1332
    %v1334 = vrot.slane %v1323, %v1333
    %v1335 = vlaneseq
    %v1336 = vshrl.u32 %v1335, 7
    %v1337 = vsub.s32 0, %v1336
    %v1338 = vrot.slane %v1330, %v1337
    %v1341 = vadd.f32 %v1304, %v1334
    %v1342 = vadd.f32 %v1307, %v1338
    %v1343 = vadd.f32 %v1341, %v177
    %v1344 = vadd.f32 %v1342, %v177
    %v1345 = vsel %vm239, %v1343, -inf
    %v1346 = vrot.slane %v1345, 4
    %v1347 = vmax.f32 %v1345, %v1346
    %v1348 = vrot.slane %v1347, 2
    %v1349 = vmax.f32 %v1347, %v1348
    %v1350 = vrot.slane %v1349, 1
    %v1351 = vmax.f32 %v1349, %v1350
    %v1352 = vsel %vm239, %v1344, -inf
    %v1353 = vrot.slane %v1352, 4
    %v1354 = vmax.f32 %v1352, %v1353
    %v1355 = vrot.slane %v1354, 2
    %v1356 = vmax.f32 %v1354, %v1355
    %v1357 = vrot.slane %v1356, 1
    %v1358 = vmax.f32 %v1356, %v1357
    %v1359 = vsub.f32 %v1343, %v1351
    %v1360 = vsub.f32 %v1344, %v1358
    %v1361 = vmul.f32 %v1359, 1.442695
    %v1362 = vpow.pop %v1361
    %v1363 = vmul.f32 %v1360, 1.442695
    %v1364 = vpow.pop %v1363
    %v1365 = vsel %vm239, %v1362, 0.0
    %v1366 = vrot.slane %v1365, 4
    %v1367 = vadd.f32 %v1365, %v1366
    %v1368 = vrot.slane %v1367, 2
    %v1369 = vadd.f32 %v1367, %v1368
    %v1370 = vrot.slane %v1369, 1
    %v1371 = vadd.f32 %v1369, %v1370
    %v1372 = vsel %vm239, %v1364, 0.0
    %v1373 = vrot.slane %v1372, 4
    %v1374 = vadd.f32 %v1372, %v1373
    %v1375 = vrot.slane %v1374, 2
    %v1376 = vadd.f32 %v1374, %v1375
    %v1377 = vrot.slane %v1376, 1
    %v1378 = vadd.f32 %v1376, %v1377
    %v1379 = vlog2.pop %v1371
    %v1380 = vmul.f32 %v1379, 0.6931472
    %v1381 = vlog2.pop %v1378
    %v1382 = vmul.f32 %v1381, 0.6931472
    %v1383 = vadd.f32 %v1351, %v1380
    %v1384 = vadd.f32 %v1358, %v1382
    %s1385 = scalar_lea.vmem %s0, 30
    %v1386 = vld [vmem:[%s1385] sm:$0x3]
    %1388 = vbcast.lane.b32.xlu0 %v1383, 256
    %v1389 = vpop.permute.xlu0 %1388
    %1391 = vbcast.lane.b32.xlu0 %v1384, 256
    %v1392 = vpop.permute.xlu0 %1391
    %v1395 = vunpack.c.l.s4 1966171168
    %v1396 = vunpack.c.0.s8 %v1395
    %v1397 = vlaneseq
    %v1398 = vshrl.u32 %v1397, 7
    %v1399 = vsub.s32 %v1396, %v1398
    %v1400 = vrot.slane %v1386, %v1399
    %v1401 = vcombine.high %v1400, %v1400
    %v1403 = vunpack.c.l.s4 1966171168
    %v1404 = vunpack.c.0.s8 %v1403
    %v1405 = vlaneseq
    %v1406 = vshrl.u32 %v1405, 7
    %v1407 = vsub.s32 %v1404, %v1406
    %v1408 = vrot.slane %v1400, %v1407
    %v1410 = vunpack.c.l.s4 1966171168
    %v1411 = vunpack.c.0.s8 %v1410
    %v1412 = vlaneseq
    %v1413 = vshrl.u32 %v1412, 7
    %v1414 = vsub.s32 %v1411, %v1413
    %v1415 = vrot.slane %v1401, %v1414
    %v1416 = vlaneseq
    %v1417 = vshrl.u32 %v1416, 7
    %v1418 = vsub.s32 0, %v1417
    %v1419 = vrot.slane %v1408, %v1418
    %v1420 = vlaneseq
    %v1421 = vshrl.u32 %v1420, 7
    %v1422 = vsub.s32 0, %v1421
    %v1423 = vrot.slane %v1415, %v1422
    %v1426 = vadd.f32 %v1389, %v1419
    %v1427 = vadd.f32 %v1392, %v1423
    %v1428 = vadd.f32 %v1426, %v177
    %v1429 = vadd.f32 %v1427, %v177
    %v1430 = vsel %vm239, %v1428, -inf
    %v1431 = vrot.slane %v1430, 4
    %v1432 = vmax.f32 %v1430, %v1431
    %v1433 = vrot.slane %v1432, 2
    %v1434 = vmax.f32 %v1432, %v1433
    %v1435 = vrot.slane %v1434, 1
    %v1436 = vmax.f32 %v1434, %v1435
    %v1437 = vsel %vm239, %v1429, -inf
    %v1438 = vrot.slane %v1437, 4
    %v1439 = vmax.f32 %v1437, %v1438
    %v1440 = vrot.slane %v1439, 2
    %v1441 = vmax.f32 %v1439, %v1440
    %v1442 = vrot.slane %v1441, 1
    %v1443 = vmax.f32 %v1441, %v1442
    %v1444 = vsub.f32 %v1428, %v1436
    %v1445 = vsub.f32 %v1429, %v1443
    %v1446 = vmul.f32 %v1444, 1.442695
    %v1447 = vpow.pop %v1446
    %v1448 = vmul.f32 %v1445, 1.442695
    %v1449 = vpow.pop %v1448
    %v1450 = vsel %vm239, %v1447, 0.0
    %v1451 = vrot.slane %v1450, 4
    %v1452 = vadd.f32 %v1450, %v1451
    %v1453 = vrot.slane %v1452, 2
    %v1454 = vadd.f32 %v1452, %v1453
    %v1455 = vrot.slane %v1454, 1
    %v1456 = vadd.f32 %v1454, %v1455
    %v1457 = vsel %vm239, %v1449, 0.0
    %v1458 = vrot.slane %v1457, 4
    %v1459 = vadd.f32 %v1457, %v1458
    %v1460 = vrot.slane %v1459, 2
    %v1461 = vadd.f32 %v1459, %v1460
    %v1462 = vrot.slane %v1461, 1
    %v1463 = vadd.f32 %v1461, %v1462
    %v1464 = vlog2.pop %v1456
    %v1465 = vmul.f32 %v1464, 0.6931472
    %v1466 = vlog2.pop %v1463
    %v1467 = vmul.f32 %v1466, 0.6931472
    %v1468 = vadd.f32 %v1436, %v1465
    %v1469 = vadd.f32 %v1443, %v1467
    %v1471 = vlaneseq
    %v1472 = vshrl.u32 %v1471, 7
    %v1473 = vsub.s32 0, %v1472
    %v1474 = vrot.slane %v176, %v1473
    %v1476 = vadd.f32 %v1468, %v1474
    %v1477 = vadd.f32 %v1469, %v1474
    %v1480 = vrot.slane %v1477, 7
    %v1481 = vsel %vm93, %v1480, %v1476
    %vm1483 = vcmask 17408
    %v1484 = vsel %vm1483, %v1481, -inf
    %1485 = vmax.xlane.f32.xlu0 %v1484
    %v1486 = vpop.xlane.xlu0 %1485
    %v1488 = vrot.slane %v1486, 1
    %v1491 = vsub.f32 %v1476, %v1486
    %v1492 = vsub.f32 %v1477, %v1488
    %v1493 = vmul.f32 %v1491, 1.442695
    %v1494 = vpow.pop %v1493
    %v1495 = vmul.f32 %v1492, 1.442695
    %v1496 = vpow.pop %v1495
    %v1499 = vrot.slane %v1496, 7
    %v1500 = vsel %vm93, %v1499, %v1494
    %v1502 = vsel %vm1483, %v1500, 0.0
    %1503 = vadd.xlane.f32.xlu0 %v1502
    %v1504 = vpop.xlane.xlu0 %1503
    %v1505 = vlog2.pop %v1504
    %v1506 = vmul.f32 %v1505, 0.6931472
    %v1507 = vadd.f32 %v1486, %v1506
    %v1508 = vsub.f32 %v174, %v1507
    %vm1509 = vcmask 1024
    %1510 = vst.msk [vmem:[%s8] sm:$0x3] %vm1509, %v1508
    %v1511 = vld [vmem:[%s2] sm:$0x3]
    %s1512 = scalar_lea.vmem %s2, 2
    %v1513 = vld [vmem:[%s1512] sm:$0x3]
    %vm1514 = vcmp.gt.f32.partialorder %v1513, %v1511
    %v1515 = vsel %vm1514, %v1513, %v1511
    %v1516 = vsel %vm1514, 1, 0
    %s1517 = scalar_lea.vmem %s2, 4
    %v1518 = vld [vmem:[%s1517] sm:$0x3]
    %vm1519 = vcmp.gt.f32.partialorder %v1518, %v1515
    %v1520 = vsel %vm1519, 2, %v1516
    %1521 = vst.msk [vmem:[#allocation5] sm:$0x3] %vm51, %v1520
    // Predicated region
    $region38: #{tpu_custom_call.1} parent=1 // pred_check
      _
    $region39: #{tpu_custom_call.1} parent=1 // pred_check_branch
      %1523 = sbr.rel (0) target = $region41
    $region40: #{tpu_custom_call.1} parent=1 // pred_region
      _
    $region41: #{tpu_custom_call.1} parent=1 // pred_fallthru
      _
    // Predicated region
    $region42: #{tpu_custom_call.1} parent=1 // pred_check
      _
    $region43: #{tpu_custom_call.1} parent=1 // pred_check_branch
      %1525 = sbr.rel (0) target = $region45
    $region44: #{tpu_custom_call.1} parent=1 // pred_region
      %s1527 = ssub.s32 32, 32
      %1528 = vsyncadd [#allocation3], %s1527
      %s1530 = sshll.u32 [#allocation5], 4
      %s1531 = int_to_ptr.vmem [resolvable:$true] %s1530
      %1533 = dma.vmem_to_hbm [thread:$0]  %s1531, 32, %s9, [#allocation3]
    $region45: #{tpu_custom_call.1} parent=1 // pred_fallthru
      _
    // Predicated region
    $region46: #{tpu_custom_call.1} parent=1 // pred_check
      _
    $region47: #{tpu_custom_call.1} parent=1 // pred_check_branch
      %1535 = sbr.rel (0) target = $region49
    $region48: #{tpu_custom_call.1} parent=1 // pred_region
      _
    $region49: #{tpu_custom_call.1} parent=1 // pred_fallthru
      _
    // Predicated region
    $region50: #{tpu_custom_call.1} parent=1 // pred_check
      _
    $region51: #{tpu_custom_call.1} parent=1 // pred_check_branch
      %1537 = sbr.rel (0) target = $region53
    $region52: #{tpu_custom_call.1} parent=1 // pred_region
      %1538 = dma.done [#allocation3], 32
    $region53: #{tpu_custom_call.1} parent=1 // pred_fallthru
      _
    %1539 = vsyncpa [#allocation3], 1
    %1540 = vsyncpa [#allocation4], 1

</llo_original>
